<compile_context>
chip_gen: v6e
topology: v6e:2x2x1
jax: 0.10.0
libtpu: 0.0.40
codegen_flags: <defaults>
</compile_context>

<pallas_src>
import jax
import jax.numpy as jnp
import numpy as np
from jax import lax
from jax.experimental import pallas as pl
from jax.experimental.pallas import tpu as pltpu

# ----------------------- model configuration (small) -----------------------
VOCAB = 256
HIDDEN = 64
N_HEADS = 4
HEAD_DIM = HIDDEN // N_HEADS          # 16
INTERMEDIATE = 128
N_LAYERS = 2
SEQ = 8
RMS_EPS = 1e-6
ROPE_THETA = 10000.0
LOGIT_SCALE = 1.0


# ------------------------------ shared math ---------------------------------

def _rms(x, w):
    # RMSNorm in f32.
    var = jnp.mean(x * x, axis=-1, keepdims=True)
    return x * lax.rsqrt(var + RMS_EPS) * w


# ------------------------------ Pallas kernel -------------------------------

def _decoder_kernel(x_ref, cos_ref, sin_ref, bias_ref,
                    ln1_ref, wqkv_ref, wo_ref, ln2_ref, wgu_ref, wd_ref,
                    lnf_ref, lmh_ref,
                    hid_ref, logits_ref,
                    h_scr):
    """One decoder layer per grid step; residual stream lives in VMEM scratch."""
    layer = pl.program_id(0)
    S = x_ref.shape[0]

    @pl.when(layer == 0)
    def _():
        h_scr[...] = x_ref[...]

    h = h_scr[...]                       # (S, H) f32 residual stream
    cos = cos_ref[...]                   # (NH*S, D), tiled across heads
    sinf = sin_ref[...]                  # (NH*S, D), rotate_half sign folded in
    bias = bias_ref[...]                 # (NH*S, NH*S) additive block-diag causal mask

    def pack_heads(x):                   # (S, H) -> (NH*S, D); rows are head-major
        return jnp.concatenate(
            [x[:, i * HEAD_DIM:(i + 1) * HEAD_DIM] for i in range(N_HEADS)], axis=0)

    def unpack_heads(x):                 # (NH*S, D) -> (S, H)
        return jnp.concatenate(
            [x[i * S:(i + 1) * S, :] for i in range(N_HEADS)], axis=1)

    def rope(x):
        # x*cos + rotate_half(x)*sin; sign of [-x2, x1] is pre-folded into sinf.
        # One roll + FMA covers ALL heads at once on the packed (NH*S, D) slab.
        return x * cos + pltpu.roll(x, shift=HEAD_DIM // 2, axis=1) * sinf

    # ----------------- attention block -----------------
    res = h
    xn = _rms(h, ln1_ref[0])
    # Fused QKV matmul; softmax scale is pre-folded into the Q columns of wqkv.
    qkv = jnp.dot(xn.astype(jnp.bfloat16), wqkv_ref[0],
                  preferred_element_type=jnp.float32)            # (S, 3H) f32
    q32 = rope(pack_heads(qkv[:, :HIDDEN]))                      # (NH*S, D)
    k32 = rope(pack_heads(qkv[:, HIDDEN:2 * HIDDEN]))
    v32 = pack_heads(qkv[:, 2 * HIDDEN:])

    # All-head scores in ONE NT matmul (contract dim 1 of both — no K transpose),
    # cross-head and non-causal entries killed by the additive bias.
    s = lax.dot_general(q32, k32, (((1,), (1,)), ((), ())),
                        preferred_element_type=jnp.float32) + bias   # (NH*S, NH*S)
    m = jnp.max(s, axis=-1, keepdims=True)
    p = jnp.exp(s - m)
    denom = jnp.sum(p, axis=-1, keepdims=True)
    o32 = jnp.dot(p, v32, preferred_element_type=jnp.float32)        # (NH*S, D)
    o32 = o32 * pl.reciprocal(denom, approx=True)                    # deferred softmax norm
    attn = unpack_heads(o32)                                         # (S, H)
    # Single output-projection matmul for all heads.
    h = res + jnp.dot(attn.astype(jnp.bfloat16), wo_ref[0],
                      preferred_element_type=jnp.float32)

    # ----------------- MLP block (SwiGLU) -----------------
    res = h
    xn = _rms(h, ln2_ref[0])
    gu = jnp.dot(xn.astype(jnp.bfloat16), wgu_ref[0],
                 preferred_element_type=jnp.float32)                 # (S, 2I)
    g = gu[:, :INTERMEDIATE]
    u = gu[:, INTERMEDIATE:]
    act = g * jax.nn.sigmoid(g) * u
    h = res + jnp.dot(act.astype(jnp.bfloat16), wd_ref[0],
                      preferred_element_type=jnp.float32)

    h_scr[...] = h

    @pl.when(layer == pl.num_programs(0) - 1)
    def _():
        hn = _rms(h, lnf_ref[...])
        hid_ref[...] = hn
        # lm_head fused into the same kernel (logit_scale folded at init).
        logits_ref[...] = jnp.dot(hn.astype(jnp.bfloat16), lmh_ref[...],
                                  preferred_element_type=jnp.float32)


def _const_spec(arr):
    nd = arr.ndim
    return pl.BlockSpec(arr.shape, lambda l, _nd=nd: (0,) * _nd)


def _layer_spec(arr):
    nd = arr.ndim
    block = (1,) + tuple(arr.shape[1:])
    return pl.BlockSpec(block, lambda l, _nd=nd: (l,) + (0,) * (_nd - 1))


def fused_forward(h0, cos32, sin32, bias, ln1, wqkv, wo, ln2, wgu, wd, lnf, lm_head):
    S, H = h0.shape
    in_specs = [
        _const_spec(h0), _const_spec(cos32), _const_spec(sin32), _const_spec(bias),
        _layer_spec(ln1), _layer_spec(wqkv), _layer_spec(wo),
        _layer_spec(ln2), _layer_spec(wgu), _layer_spec(wd),
        _const_spec(lnf), _const_spec(lm_head),
    ]
    out_shape = (jax.ShapeDtypeStruct((S, H), jnp.float32),
                 jax.ShapeDtypeStruct((S, VOCAB), jnp.float32))
    out_specs = (pl.BlockSpec((S, H), lambda l: (0, 0)),
                 pl.BlockSpec((S, VOCAB), lambda l: (0, 0)))
    return pl.pallas_call(
        _decoder_kernel,
        out_shape=out_shape,
        grid=(N_LAYERS,),                 # per-layer grid -> layer l+1 weight DMA
        in_specs=in_specs,                # is prefetched during layer l compute
        out_specs=out_specs,
        scratch_shapes=[pltpu.VMEM((S, H), jnp.float32)],
        compiler_params=pltpu.CompilerParams(
            dimension_semantics=("arbitrary",)),
    )(h0, cos32, sin32, bias, ln1, wqkv, wo, ln2, wgu, wd, lnf, lm_head)


# ------------------------------ parameters ----------------------------------

def init_params(key):
    def w(k, shape, scale=0.02):
        return (scale * jax.random.normal(k, shape)).astype(jnp.float32)

    keys = jax.random.split(key, 2 + N_LAYERS)
    q_scale = HEAD_DIM ** -0.5
    wqkv, wo, wgu, wd = [], [], [], []
    for l in range(N_LAYERS):
        lk = jax.random.split(keys[2 + l], 7)
        wq = w(lk[0], (HIDDEN, HIDDEN)) * q_scale       # softmax scale folded in
        wk = w(lk[1], (HIDDEN, HIDDEN))
        wv = w(lk[2], (HIDDEN, HIDDEN))
        wqkv.append(jnp.concatenate([wq, wk, wv], axis=1))      # (H, 3H) fused QKV
        wo.append(w(lk[3], (HIDDEN, HIDDEN)))
        wg = w(lk[4], (HIDDEN, INTERMEDIATE))
        wu = w(lk[5], (HIDDEN, INTERMEDIATE))
        wgu.append(jnp.concatenate([wg, wu], axis=1))           # (H, 2I) fused gate/up
        wd.append(w(lk[6], (INTERMEDIATE, HIDDEN)))

    bf16 = jnp.bfloat16                   # matmul weights stored bf16 (halved DMA)
    return {
        "embed": w(keys[0], (VOCAB, HIDDEN)),                            # f32 gather table
        "lm_head": (w(keys[1], (HIDDEN, VOCAB)) * LOGIT_SCALE).astype(bf16),
        "ln_f": jnp.ones((1, HIDDEN), jnp.float32),
        "ln1": jnp.ones((N_LAYERS, 1, HIDDEN), jnp.float32),
        "ln2": jnp.ones((N_LAYERS, 1, HIDDEN), jnp.float32),
        "wqkv": jnp.stack(wqkv).astype(bf16),                            # (L, H, 3H)
        "wo": jnp.stack(wo).astype(bf16),                                # (L, H, H)
        "wgu": jnp.stack(wgu).astype(bf16),                              # (L, H, 2I)
        "wd": jnp.stack(wd).astype(bf16),                                # (L, I, H)
    }


def rope_tables(positions):
    inv_freq = 1.0 / (ROPE_THETA ** (
        jnp.arange(0, HEAD_DIM, 2, dtype=jnp.float32) / HEAD_DIM))      # (D/2,)
    freqs = positions.astype(jnp.float32)[:, None] * inv_freq[None, :]  # (S, D/2)
    cos = jnp.cos(jnp.concatenate([freqs, freqs], axis=-1))             # (S, D)
    sh = jnp.sin(freqs)
    sinf = jnp.concatenate([-sh, sh], axis=-1)                          # sign folded
    # Tile across heads to match the sublane-packed (N_HEADS*S, D) Q/K layout.
    return jnp.tile(cos, (N_HEADS, 1)), jnp.tile(sinf, (N_HEADS, 1))


def packed_attn_bias():
    # Additive mask for the packed (N_HEADS*S, N_HEADS*S) score matrix:
    # row r = head*S + pos.  Allow same-head, causal entries only.
    r = jnp.arange(N_HEADS * SEQ)
    same_head = (r[:, None] // SEQ) == (r[None, :] // SEQ)
    causal = (r[None, :] % SEQ) <= (r[:, None] % SEQ)
    return jnp.where(same_head & causal, 0.0, -1e30).astype(jnp.float32)


# ------------------------------ forward pass --------------------------------

@jax.jit
def forward(params, input_ids, positions):
    """TransformersForCausalLM.forward + compute_logits, fused in ONE pallas_call.

    Returns (hidden_states, logits) == (forward() output, compute_logits() output).
    """
    # VocabParallelEmbedding lookup: plain XLA row gather (8 rows).
    h0 = jnp.take(params["embed"], input_ids, axis=0)                   # (S, H) f32
    cos32, sin32 = rope_tables(positions)
    bias = packed_attn_bias()
    # TODO(synk): vLLM KV-cache / paged Attention instances (use_cache=False,
    # prefill-only path here), PP/TP sharding, quantization and LoRA are
    # runtime infrastructure, not reproduced.
    return fused_forward(h0, cos32, sin32, bias,
                         params["ln1"], params["wqkv"], params["wo"],
                         params["ln2"], params["wgu"], params["wd"],
                         params["ln_f"], params["lm_head"])


@jax.jit
def compute_logits(params, hidden_states):
    """Standalone compute_logits equivalent (API parity).

    Per the perf review a separate pallas_call is not worth its launch +
    HBM round trip; the main path gets logits fused from forward() above.
    """
    return jnp.dot(hidden_states.astype(jnp.bfloat16), params["lm_head"],
                   preferred_element_type=jnp.float32)


# --------------------------- pure-JAX f32 reference --------------------------

@jax.jit
def reference_forward(params, input_ids, positions):
    f32, hp = jnp.float32, lax.Precision.HIGHEST
    h = jnp.take(params["embed"], input_ids, axis=0).astype(f32)
    D = HEAD_DIM
    inv_freq = 1.0 / (ROPE_THETA ** (jnp.arange(0, D, 2, dtype=f32) / D))
    freqs = positions.astype(f32)[:, None] * inv_freq[None, :]
    cos = jnp.cos(jnp.concatenate([freqs, freqs], -1))
    sin = jnp.sin(jnp.concatenate([freqs, freqs], -1))

    def rot_half(x):
        return jnp.concatenate([-x[:, D // 2:], x[:, :D // 2]], axis=-1)

    for l in range(N_LAYERS):
        res = h
        xn = _rms(h, params["ln1"][l])
        # Note: softmax scale is already folded into the stored Q columns.
        qkv = jnp.dot(xn, params["wqkv"][l].astype(f32), precision=hp)
        q, k, v = qkv[:, :HIDDEN], qkv[:, HIDDEN:2 * HIDDEN], qkv[:, 2 * HIDDEN:]
        outs = []
        causal = jnp.tril(jnp.ones((SEQ, SEQ), bool))
        for hh in range(N_HEADS):
            sl = slice(hh * D, (hh + 1) * D)
            qh = q[:, sl] * cos + rot_half(q[:, sl]) * sin
            kh = k[:, sl] * cos + rot_half(k[:, sl]) * sin
            s = jnp.dot(qh, kh.T, precision=hp)
            s = jnp.where(causal, s, -jnp.inf)
            p = jax.nn.softmax(s, axis=-1)
            outs.append(jnp.dot(p, v[:, sl], precision=hp))
        attn = jnp.concatenate(outs, axis=1)
        h = res + jnp.dot(attn, params["wo"][l].astype(f32), precision=hp)

        res = h
        xn = _rms(h, params["ln2"][l])
        gu = jnp.dot(xn, params["wgu"][l].astype(f32), precision=hp)
        g, u = gu[:, :INTERMEDIATE], gu[:, INTERMEDIATE:]
        h = res + jnp.dot(g * jax.nn.sigmoid(g) * u,
                          params["wd"][l].astype(f32), precision=hp)

    hidden = _rms(h, params["ln_f"])
    logits = jnp.dot(hidden, params["lm_head"].astype(f32), precision=hp)
    return hidden, logits


# ----------------------------------- main ------------------------------------

if __name__ == "__main__":
    key = jax.random.PRNGKey(0)
    pkey, ikey = jax.random.split(key)

    params = init_params(pkey)
    input_ids = jax.random.randint(ikey, (SEQ,), 0, VOCAB, dtype=jnp.int32)
    positions = jnp.arange(SEQ, dtype=jnp.int32)

    hidden_states, logits = forward(params, input_ids, positions)
    logits_standalone = compute_logits(params, hidden_states)
    jax.block_until_ready((hidden_states, logits, logits_standalone))

    assert hidden_states.shape == (SEQ, HIDDEN)
    assert logits.shape == (SEQ, VOCAB)
    assert logits_standalone.shape == (SEQ, VOCAB)

    # Verify the packed-head / folded-RoPE / folded-scale kernel against a plain
    # per-head f32 reference (tolerance covers the kernel's bf16 matmul path).
    hid_ref, log_ref = reference_forward(params, input_ids, positions)
    np.testing.assert_allclose(np.asarray(hidden_states), np.asarray(hid_ref),
                               rtol=5e-2, atol=5e-2)
    np.testing.assert_allclose(np.asarray(logits), np.asarray(log_ref),
                               rtol=5e-2, atol=5e-2)
    np.testing.assert_allclose(np.asarray(logits_standalone), np.asarray(log_ref),
                               rtol=5e-2, atol=5e-2)

    print("KERNEL_OK")
</pallas_src>

<mosaic_0001>
module attributes {stable_mosaic.version = 11 : i64} {
  func.func @_decoder_kernel(%arg0: i32, %arg1: memref<8x64xf32, #tpu.memory_space<vmem>>, %arg2: memref<32x16xf32, #tpu.memory_space<vmem>>, %arg3: memref<32x16xf32, #tpu.memory_space<vmem>>, %arg4: memref<32x32xf32, #tpu.memory_space<vmem>>, %arg5: memref<1x1x64xf32, #tpu.memory_space<vmem>>, %arg6: memref<1x64x192xbf16, #tpu.memory_space<vmem>>, %arg7: memref<1x64x64xbf16, #tpu.memory_space<vmem>>, %arg8: memref<1x1x64xf32, #tpu.memory_space<vmem>>, %arg9: memref<1x64x256xbf16, #tpu.memory_space<vmem>>, %arg10: memref<1x128x64xbf16, #tpu.memory_space<vmem>>, %arg11: memref<1x64xf32, #tpu.memory_space<vmem>>, %arg12: memref<64x256xbf16, #tpu.memory_space<vmem>>, %arg13: memref<8x64xf32, #tpu.memory_space<vmem>>, %arg14: memref<8x256xf32, #tpu.memory_space<vmem>>, %arg15: memref<8x64xf32, #tpu.memory_space<vmem>>) attributes {dimension_semantics = [#tpu.dimension_semantics<arbitrary>], iteration_bounds = array<i64: 2>, scalar_prefetch = 0 : i64, scratch_operands = 1 : i64, tpu.core_type = #tpu.core_type<tc>, window_params = [{pipeline_mode = #tpu.pipeline_mode<synchronous>, transform_indices = @transform_0, window_bounds = array<i64: 8, 64>}, {pipeline_mode = #tpu.pipeline_mode<synchronous>, transform_indices = @transform_1, window_bounds = array<i64: 32, 16>}, {pipeline_mode = #tpu.pipeline_mode<synchronous>, transform_indices = @transform_2, window_bounds = array<i64: 32, 16>}, {pipeline_mode = #tpu.pipeline_mode<synchronous>, transform_indices = @transform_3, window_bounds = array<i64: 32, 32>}, {transform_indices = @transform_4, window_bounds = array<i64: 1, 1, 64>}, {transform_indices = @transform_5, window_bounds = array<i64: 1, 64, 192>}, {transform_indices = @transform_6, window_bounds = array<i64: 1, 64, 64>}, {transform_indices = @transform_7, window_bounds = array<i64: 1, 1, 64>}, {transform_indices = @transform_8, window_bounds = array<i64: 1, 64, 256>}, {transform_indices = @transform_9, window_bounds = array<i64: 1, 128, 64>}, {pipeline_mode = #tpu.pipeline_mode<synchronous>, transform_indices = @transform_10, window_bounds = array<i64: 1, 64>}, {pipeline_mode = #tpu.pipeline_mode<synchronous>, transform_indices = @transform_11, window_bounds = array<i64: 64, 256>}, {pipeline_mode = #tpu.pipeline_mode<synchronous>, transform_indices = @transform_12, window_bounds = array<i64: 8, 64>}, {pipeline_mode = #tpu.pipeline_mode<synchronous>, transform_indices = @transform_13, window_bounds = array<i64: 8, 256>}]} {
    %c0_i32 = arith.constant 0 : i32
    %0 = arith.cmpi eq, %arg0, %c0_i32 : i32
    %1 = arith.extui %0 : i1 to i32
    %c0_i32_0 = arith.constant 0 : i32
    %2 = arith.cmpi ne, %1, %c0_i32_0 : i32
    scf.if %2 {
      %c0_44 = arith.constant 0 : index
      %c0_45 = arith.constant 0 : index
      %110 = vector.load %arg1[%c0_44, %c0_45] : memref<8x64xf32, #tpu.memory_space<vmem>>, vector<8x64xf32>
      %c0_46 = arith.constant 0 : index
      %c0_47 = arith.constant 0 : index
      %111 = vector.load %arg15[%c0_46, %c0_47] : memref<8x64xf32, #tpu.memory_space<vmem>>, vector<8x64xf32>
      tpu.vector_store %arg15[%c0_46, %c0_47], %110 {strides = array<i32>} : memref<8x64xf32, #tpu.memory_space<vmem>>, vector<8x64xf32>,
    } else {
    }
    %c0 = arith.constant 0 : index
    %c0_1 = arith.constant 0 : index
    %3 = vector.load %arg15[%c0, %c0_1] : memref<8x64xf32, #tpu.memory_space<vmem>>, vector<8x64xf32>
    %c0_2 = arith.constant 0 : index
    %c0_3 = arith.constant 0 : index
    %4 = vector.load %arg2[%c0_2, %c0_3] : memref<32x16xf32, #tpu.memory_space<vmem>>, vector<32x16xf32>
    %c0_4 = arith.constant 0 : index
    %c0_5 = arith.constant 0 : index
    %5 = vector.load %arg3[%c0_4, %c0_5] : memref<32x16xf32, #tpu.memory_space<vmem>>, vector<32x16xf32>
    %c0_6 = arith.constant 0 : index
    %c0_7 = arith.constant 0 : index
    %6 = vector.load %arg4[%c0_6, %c0_7] : memref<32x32xf32, #tpu.memory_space<vmem>>, vector<32x32xf32>
    %c0_8 = arith.constant 0 : index
    %c0_9 = arith.constant 0 : index
    %c0_10 = arith.constant 0 : index
    %7 = vector.load %arg5[%c0_8, %c0_9, %c0_10] : memref<1x1x64xf32, #tpu.memory_space<vmem>>, vector<1x1x64xf32>
    %8 = vector.shape_cast %7 : vector<1x1x64xf32> to vector<1x64xf32>
    %9 = arith.mulf %3, %3 : vector<8x64xf32>
    %cst = arith.constant dense<0.000000e+00> : vector<8xf32>
    %10 = vector.multi_reduction <add>, %9, %cst [1] : vector<8x64xf32> to vector<8xf32>
    %11 = vector.shape_cast %10 : vector<8xf32> to vector<8x1xf32>
    %cst_11 = arith.constant 6.400000e+01 : f32
    %12 = vector.broadcast %cst_11 : f32 to vector<8x1xf32>
    %13 = arith.divf %11, %12 : vector<8x1xf32>
    %cst_12 = arith.constant 9.99999997E-7 : f32
    %14 = vector.broadcast %cst_12 : f32 to vector<8x1xf32>
    %15 = arith.addf %13, %14 : vector<8x1xf32>
    %16 = math.rsqrt %15 : vector<8x1xf32>
    %17 = vector.broadcast %16 : vector<8x1xf32> to vector<8x64xf32>
    %18 = arith.mulf %3, %17 : vector<8x64xf32>
    %19 = vector.broadcast %8 : vector<1x64xf32> to vector<8x64xf32>
    %20 = arith.mulf %18, %19 : vector<8x64xf32>
    %21 = arith.truncf %20 : vector<8x64xf32> to vector<8x64xbf16>
    %c0_13 = arith.constant 0 : index
    %c0_14 = arith.constant 0 : index
    %c0_15 = arith.constant 0 : index
    %22 = vector.load %arg6[%c0_13, %c0_14, %c0_15] : memref<1x64x192xbf16, #tpu.memory_space<vmem>>, vector<1x64x192xbf16>
    %23 = vector.shape_cast %22 : vector<1x64x192xbf16> to vector<64x192xbf16>
    %cst_16 = arith.constant dense<0.000000e+00> : vector<8x192xf32>
    %24 = tpu.matmul %21, %23, %cst_16 {dimension_numbers = #tpu.dot_dimension_numbers<[1], [0], [0], [1], [0, 0, 1, 1], [], []>} : vector<8x64xbf16>, vector<64x192xbf16>, vector<8x192xf32> -> vector<8x192xf32>
    %25 = vector.extract_strided_slice %24 {offsets = [0, 0], sizes = [8, 64], strides = [1, 1]} : vector<8x192xf32> to vector<8x64xf32>
    %26 = vector.extract_strided_slice %25 {offsets = [0, 0], sizes = [8, 16], strides = [1, 1]} : vector<8x64xf32> to vector<8x16xf32>
    %27 = vector.extract_strided_slice %25 {offsets = [0, 16], sizes = [8, 16], strides = [1, 1]} : vector<8x64xf32> to vector<8x16xf32>
    %28 = vector.extract_strided_slice %25 {offsets = [0, 32], sizes = [8, 16], strides = [1, 1]} : vector<8x64xf32> to vector<8x16xf32>
    %29 = vector.extract_strided_slice %25 {offsets = [0, 48], sizes = [8, 16], strides = [1, 1]} : vector<8x64xf32> to vector<8x16xf32>
    %30 = tpu.concatenate %26, %27, %28, %29 in 0 : vector<8x16xf32>, vector<8x16xf32>, vector<8x16xf32>, vector<8x16xf32> -> vector<32x16xf32>
    %31 = arith.mulf %30, %4 : vector<32x16xf32>
    %c8_i32 = arith.constant 8 : i32
    %32 = tpu.dynamic_rotate %30 by %c8_i32 dim 1 : vector<32x16xf32>, i32 -> vector<32x16xf32>
    %33 = arith.mulf %32, %5 : vector<32x16xf32>
    %34 = arith.addf %31, %33 : vector<32x16xf32>
    %35 = vector.extract_strided_slice %24 {offsets = [0, 64], sizes = [8, 64], strides = [1, 1]} : vector<8x192xf32> to vector<8x64xf32>
    %36 = vector.extract_strided_slice %35 {offsets = [0, 0], sizes = [8, 16], strides = [1, 1]} : vector<8x64xf32> to vector<8x16xf32>
    %37 = vector.extract_strided_slice %35 {offsets = [0, 16], sizes = [8, 16], strides = [1, 1]} : vector<8x64xf32> to vector<8x16xf32>
    %38 = vector.extract_strided_slice %35 {offsets = [0, 32], sizes = [8, 16], strides = [1, 1]} : vector<8x64xf32> to vector<8x16xf32>
    %39 = vector.extract_strided_slice %35 {offsets = [0, 48], sizes = [8, 16], strides = [1, 1]} : vector<8x64xf32> to vector<8x16xf32>
    %40 = tpu.concatenate %36, %37, %38, %39 in 0 : vector<8x16xf32>, vector<8x16xf32>, vector<8x16xf32>, vector<8x16xf32> -> vector<32x16xf32>
    %41 = arith.mulf %40, %4 : vector<32x16xf32>
    %c8_i32_17 = arith.constant 8 : i32
    %42 = tpu.dynamic_rotate %40 by %c8_i32_17 dim 1 : vector<32x16xf32>, i32 -> vector<32x16xf32>
    %43 = arith.mulf %42, %5 : vector<32x16xf32>
    %44 = arith.addf %41, %43 : vector<32x16xf32>
    %45 = vector.extract_strided_slice %24 {offsets = [0, 128], sizes = [8, 64], strides = [1, 1]} : vector<8x192xf32> to vector<8x64xf32>
    %46 = vector.extract_strided_slice %45 {offsets = [0, 0], sizes = [8, 16], strides = [1, 1]} : vector<8x64xf32> to vector<8x16xf32>
    %47 = vector.extract_strided_slice %45 {offsets = [0, 16], sizes = [8, 16], strides = [1, 1]} : vector<8x64xf32> to vector<8x16xf32>
    %48 = vector.extract_strided_slice %45 {offsets = [0, 32], sizes = [8, 16], strides = [1, 1]} : vector<8x64xf32> to vector<8x16xf32>
    %49 = vector.extract_strided_slice %45 {offsets = [0, 48], sizes = [8, 16], strides = [1, 1]} : vector<8x64xf32> to vector<8x16xf32>
    %50 = tpu.concatenate %46, %47, %48, %49 in 0 : vector<8x16xf32>, vector<8x16xf32>, vector<8x16xf32>, vector<8x16xf32> -> vector<32x16xf32>
    %cst_18 = arith.constant dense<0.000000e+00> : vector<32x32xf32>
    %51 = tpu.matmul %34, %44, %cst_18 {dimension_numbers = #tpu.dot_dimension_numbers<[1], [1], [0], [0], [0, 0, 1, 0], [], []>} : vector<32x16xf32>, vector<32x16xf32>, vector<32x32xf32> -> vector<32x32xf32>
    %52 = arith.addf %51, %6 : vector<32x32xf32>
    %cst_19 = arith.constant dense<0xFF800000> : vector<32xf32>
    %53 = vector.multi_reduction <maximumf>, %52, %cst_19 [1] : vector<32x32xf32> to vector<32xf32>
    %54 = vector.shape_cast %53 : vector<32xf32> to vector<32x1xf32>
    %55 = vector.broadcast %54 : vector<32x1xf32> to vector<32x32xf32>
    %56 = arith.subf %52, %55 : vector<32x32xf32>
    %57 = math.exp %56 : vector<32x32xf32>
    %cst_20 = arith.constant dense<0.000000e+00> : vector<32xf32>
    %58 = vector.multi_reduction <add>, %57, %cst_20 [1] : vector<32x32xf32> to vector<32xf32>
    %59 = vector.shape_cast %58 : vector<32xf32> to vector<32x1xf32>
    %cst_21 = arith.constant dense<0.000000e+00> : vector<32x16xf32>
    %60 = tpu.matmul %57, %50, %cst_21 {dimension_numbers = #tpu.dot_dimension_numbers<[1], [0], [0], [1], [0, 0, 1, 1], [], []>} : vector<32x32xf32>, vector<32x16xf32>, vector<32x16xf32> -> vector<32x16xf32>
    %61 = tpu.reciprocal %59 {approx = true} : vector<32x1xf32> -> vector<32x1xf32>
    %62 = vector.broadcast %61 : vector<32x1xf32> to vector<32x16xf32>
    %63 = arith.mulf %60, %62 : vector<32x16xf32>
    %64 = vector.extract_strided_slice %63 {offsets = [0, 0], sizes = [8, 16], strides = [1, 1]} : vector<32x16xf32> to vector<8x16xf32>
    %65 = vector.extract_strided_slice %63 {offsets = [8, 0], sizes = [8, 16], strides = [1, 1]} : vector<32x16xf32> to vector<8x16xf32>
    %66 = vector.extract_strided_slice %63 {offsets = [16, 0], sizes = [8, 16], strides = [1, 1]} : vector<32x16xf32> to vector<8x16xf32>
    %67 = vector.extract_strided_slice %63 {offsets = [24, 0], sizes = [8, 16], strides = [1, 1]} : vector<32x16xf32> to vector<8x16xf32>
    %68 = tpu.concatenate %64, %65, %66, %67 in 1 : vector<8x16xf32>, vector<8x16xf32>, vector<8x16xf32>, vector<8x16xf32> -> vector<8x64xf32>
    %69 = arith.truncf %68 : vector<8x64xf32> to vector<8x64xbf16>
    %c0_22 = arith.constant 0 : index
    %c0_23 = arith.constant 0 : index
    %c0_24 = arith.constant 0 : index
    %70 = vector.load %arg7[%c0_22, %c0_23, %c0_24] : memref<1x64x64xbf16, #tpu.memory_space<vmem>>, vector<1x64x64xbf16>
    %71 = vector.shape_cast %70 : vector<1x64x64xbf16> to vector<64x64xbf16>
    %cst_25 = arith.constant dense<0.000000e+00> : vector<8x64xf32>
    %72 = tpu.matmul %69, %71, %cst_25 {dimension_numbers = #tpu.dot_dimension_numbers<[1], [0], [0], [1], [0, 0, 1, 1], [], []>} : vector<8x64xbf16>, vector<64x64xbf16>, vector<8x64xf32> -> vector<8x64xf32>
    %73 = arith.addf %3, %72 : vector<8x64xf32>
    %c0_26 = arith.constant 0 : index
    %c0_27 = arith.constant 0 : index
    %c0_28 = arith.constant 0 : index
    %74 = vector.load %arg8[%c0_26, %c0_27, %c0_28] : memref<1x1x64xf32, #tpu.memory_space<vmem>>, vector<1x1x64xf32>
    %75 = vector.shape_cast %74 : vector<1x1x64xf32> to vector<1x64xf32>
    %76 = arith.mulf %73, %73 : vector<8x64xf32>
    %cst_29 = arith.constant dense<0.000000e+00> : vector<8xf32>
    %77 = vector.multi_reduction <add>, %76, %cst_29 [1] : vector<8x64xf32> to vector<8xf32>
    %78 = vector.shape_cast %77 : vector<8xf32> to vector<8x1xf32>
    %cst_30 = arith.constant 6.400000e+01 : f32
    %79 = vector.broadcast %cst_30 : f32 to vector<8x1xf32>
    %80 = arith.divf %78, %79 : vector<8x1xf32>
    %cst_31 = arith.constant 9.99999997E-7 : f32
    %81 = vector.broadcast %cst_31 : f32 to vector<8x1xf32>
    %82 = arith.addf %80, %81 : vector<8x1xf32>
    %83 = math.rsqrt %82 : vector<8x1xf32>
    %84 = vector.broadcast %83 : vector<8x1xf32> to vector<8x64xf32>
    %85 = arith.mulf %73, %84 : vector<8x64xf32>
    %86 = vector.broadcast %75 : vector<1x64xf32> to vector<8x64xf32>
    %87 = arith.mulf %85, %86 : vector<8x64xf32>
    %88 = arith.truncf %87 : vector<8x64xf32> to vector<8x64xbf16>
    %c0_32 = arith.constant 0 : index
    %c0_33 = arith.constant 0 : index
    %c0_34 = arith.constant 0 : index
    %89 = vector.load %arg9[%c0_32, %c0_33, %c0_34] : memref<1x64x256xbf16, #tpu.memory_space<vmem>>, vector<1x64x256xbf16>
    %90 = vector.shape_cast %89 : vector<1x64x256xbf16> to vector<64x256xbf16>
    %cst_35 = arith.constant dense<0.000000e+00> : vector<8x256xf32>
    %91 = tpu.matmul %88, %90, %cst_35 {dimension_numbers = #tpu.dot_dimension_numbers<[1], [0], [0], [1], [0, 0, 1, 1], [], []>} : vector<8x64xbf16>, vector<64x256xbf16>, vector<8x256xf32> -> vector<8x256xf32>
    %92 = vector.extract_strided_slice %91 {offsets = [0, 0], sizes = [8, 128], strides = [1, 1]} : vector<8x256xf32> to vector<8x128xf32>
    %93 = vector.extract_strided_slice %91 {offsets = [0, 128], sizes = [8, 128], strides = [1, 1]} : vector<8x256xf32> to vector<8x128xf32>
    %94 = arith.negf %92 : vector<8x128xf32>
    %95 = math.exp %94 : vector<8x128xf32>
    %cst_36 = arith.constant 1.000000e+00 : f32
    %96 = vector.broadcast %cst_36 : f32 to vector<8x128xf32>
    %97 = arith.addf %96, %95 : vector<8x128xf32>
    %98 = arith.divf %96, %97 : vector<8x128xf32>
    %99 = arith.mulf %92, %98 : vector<8x128xf32>
    %100 = arith.mulf %99, %93 : vector<8x128xf32>
    %101 = arith.truncf %100 : vector<8x128xf32> to vector<8x128xbf16>
    %c0_37 = arith.constant 0 : index
    %c0_38 = arith.constant 0 : index
    %c0_39 = arith.constant 0 : index
    %102 = vector.load %arg10[%c0_37, %c0_38, %c0_39] : memref<1x128x64xbf16, #tpu.memory_space<vmem>>, vector<1x128x64xbf16>
    %103 = vector.shape_cast %102 : vector<1x128x64xbf16> to vector<128x64xbf16>
    %cst_40 = arith.constant dense<0.000000e+00> : vector<8x64xf32>
    %104 = tpu.matmul %101, %103, %cst_40 {dimension_numbers = #tpu.dot_dimension_numbers<[1], [0], [0], [1], [0, 0, 1, 1], [], []>} : vector<8x128xbf16>, vector<128x64xbf16>, vector<8x64xf32> -> vector<8x64xf32>
    %105 = arith.addf %73, %104 : vector<8x64xf32>
    %c0_41 = arith.constant 0 : index
    %c0_42 = arith.constant 0 : index
    %106 = vector.load %arg15[%c0_41, %c0_42] : memref<8x64xf32, #tpu.memory_space<vmem>>, vector<8x64xf32>
    tpu.vector_store %arg15[%c0_41, %c0_42], %105 {strides = array<i32>} : memref<8x64xf32, #tpu.memory_space<vmem>>, vector<8x64xf32>,
    %c1_i32 = arith.constant 1 : i32
    %107 = arith.cmpi eq, %arg0, %c1_i32 : i32
    %108 = arith.extui %107 : i1 to i32
    %c0_i32_43 = arith.constant 0 : i32
    %109 = arith.cmpi ne, %108, %c0_i32_43 : i32
    scf.if %109 {
      %c0_44 = arith.constant 0 : index
      %c0_45 = arith.constant 0 : index
      %110 = vector.load %arg11[%c0_44, %c0_45] : memref<1x64xf32, #tpu.memory_space<vmem>>, vector<1x64xf32>
      %111 = arith.mulf %105, %105 : vector<8x64xf32>
      %cst_46 = arith.constant dense<0.000000e+00> : vector<8xf32>
      %112 = vector.multi_reduction <add>, %111, %cst_46 [1] : vector<8x64xf32> to vector<8xf32>
      %113 = vector.shape_cast %112 : vector<8xf32> to vector<8x1xf32>
      %cst_47 = arith.constant 6.400000e+01 : f32
      %114 = vector.broadcast %cst_47 : f32 to vector<8x1xf32>
      %115 = arith.divf %113, %114 : vector<8x1xf32>
      %cst_48 = arith.constant 9.99999997E-7 : f32
      %116 = vector.broadcast %cst_48 : f32 to vector<8x1xf32>
      %117 = arith.addf %115, %116 : vector<8x1xf32>
      %118 = math.rsqrt %117 : vector<8x1xf32>
      %119 = vector.broadcast %118 : vector<8x1xf32> to vector<8x64xf32>
      %120 = arith.mulf %105, %119 : vector<8x64xf32>
      %121 = vector.broadcast %110 : vector<1x64xf32> to vector<8x64xf32>
      %122 = arith.mulf %120, %121 : vector<8x64xf32>
      %c0_49 = arith.constant 0 : index
      %c0_50 = arith.constant 0 : index
      %123 = vector.load %arg13[%c0_49, %c0_50] : memref<8x64xf32, #tpu.memory_space<vmem>>, vector<8x64xf32>
      tpu.vector_store %arg13[%c0_49, %c0_50], %122 {strides = array<i32>} : memref<8x64xf32, #tpu.memory_space<vmem>>, vector<8x64xf32>,
      %124 = arith.truncf %122 : vector<8x64xf32> to vector<8x64xbf16>
      %c0_51 = arith.constant 0 : index
      %c0_52 = arith.constant 0 : index
      %125 = vector.load %arg12[%c0_51, %c0_52] : memref<64x256xbf16, #tpu.memory_space<vmem>>, vector<64x256xbf16>
      %cst_53 = arith.constant dense<0.000000e+00> : vector<8x256xf32>
      %126 = tpu.matmul %124, %125, %cst_53 {dimension_numbers = #tpu.dot_dimension_numbers<[1], [0], [0], [1], [0, 0, 1, 1], [], []>} : vector<8x64xbf16>, vector<64x256xbf16>, vector<8x256xf32> -> vector<8x256xf32>
      %c0_54 = arith.constant 0 : index
      %c0_55 = arith.constant 0 : index
      %127 = vector.load %arg14[%c0_54, %c0_55] : memref<8x256xf32, #tpu.memory_space<vmem>>, vector<8x256xf32>
      tpu.vector_store %arg14[%c0_54, %c0_55], %126 {strides = array<i32>} : memref<8x256xf32, #tpu.memory_space<vmem>>, vector<8x256xf32>,
    } else {
    }
    return
  }
  func.func @transform_0(%arg0: i32) -> (i32, i32) {
    %c0_i32 = arith.constant 0 : i32
    %c0_i32_0 = arith.constant 0 : i32
    %c0_i32_1 = arith.constant 0 : i32
    return %c0_i32, %c0_i32_0 : i32, i32
  }
  func.func @transform_1(%arg0: i32) -> (i32, i32) {
    %c0_i32 = arith.constant 0 : i32
    %c0_i32_0 = arith.constant 0 : i32
    %c0_i32_1 = arith.constant 0 : i32
    return %c0_i32, %c0_i32_0 : i32, i32
  }
  func.func @transform_2(%arg0: i32) -> (i32, i32) {
    %c0_i32 = arith.constant 0 : i32
    %c0_i32_0 = arith.constant 0 : i32
    %c0_i32_1 = arith.constant 0 : i32
    return %c0_i32, %c0_i32_0 : i32, i32
  }
  func.func @transform_3(%arg0: i32) -> (i32, i32) {
    %c0_i32 = arith.constant 0 : i32
    %c0_i32_0 = arith.constant 0 : i32
    %c0_i32_1 = arith.constant 0 : i32
    return %c0_i32, %c0_i32_0 : i32, i32
  }
  func.func @transform_4(%arg0: i32) -> (i32, i32, i32) {
    %c0_i32 = arith.constant 0 : i32
    %c0_i32_0 = arith.constant 0 : i32
    %c0_i32_1 = arith.constant 0 : i32
    return %arg0, %c0_i32, %c0_i32_0 : i32, i32, i32
  }
  func.func @transform_5(%arg0: i32) -> (i32, i32, i32) {
    %c0_i32 = arith.constant 0 : i32
    %c0_i32_0 = arith.constant 0 : i32
    %c0_i32_1 = arith.constant 0 : i32
    return %arg0, %c0_i32, %c0_i32_0 : i32, i32, i32
  }
  func.func @transform_6(%arg0: i32) -> (i32, i32, i32) {
    %c0_i32 = arith.constant 0 : i32
    %c0_i32_0 = arith.constant 0 : i32
    %c0_i32_1 = arith.constant 0 : i32
    return %arg0, %c0_i32, %c0_i32_0 : i32, i32, i32
  }
  func.func @transform_7(%arg0: i32) -> (i32, i32, i32) {
    %c0_i32 = arith.constant 0 : i32
    %c0_i32_0 = arith.constant 0 : i32
    %c0_i32_1 = arith.constant 0 : i32
    return %arg0, %c0_i32, %c0_i32_0 : i32, i32, i32
  }
  func.func @transform_8(%arg0: i32) -> (i32, i32, i32) {
    %c0_i32 = arith.constant 0 : i32
    %c0_i32_0 = arith.constant 0 : i32
    %c0_i32_1 = arith.constant 0 : i32
    return %arg0, %c0_i32, %c0_i32_0 : i32, i32, i32
  }
  func.func @transform_9(%arg0: i32) -> (i32, i32, i32) {
    %c0_i32 = arith.constant 0 : i32
    %c0_i32_0 = arith.constant 0 : i32
    %c0_i32_1 = arith.constant 0 : i32
    return %arg0, %c0_i32, %c0_i32_0 : i32, i32, i32
  }
  func.func @transform_10(%arg0: i32) -> (i32, i32) {
    %c0_i32 = arith.constant 0 : i32
    %c0_i32_0 = arith.constant 0 : i32
    %c0_i32_1 = arith.constant 0 : i32
    return %c0_i32, %c0_i32_0 : i32, i32
  }
  func.func @transform_11(%arg0: i32) -> (i32, i32) {
    %c0_i32 = arith.constant 0 : i32
    %c0_i32_0 = arith.constant 0 : i32
    %c0_i32_1 = arith.constant 0 : i32
    return %c0_i32, %c0_i32_0 : i32, i32
  }
  func.func @transform_12(%arg0: i32) -> (i32, i32) {
    %c0_i32 = arith.constant 0 : i32
    %c0_i32_0 = arith.constant 0 : i32
    %c0_i32_1 = arith.constant 0 : i32
    return %c0_i32, %c0_i32_0 : i32, i32
  }
  func.func @transform_13(%arg0: i32) -> (i32, i32) {
    %c0_i32 = arith.constant 0 : i32
    %c0_i32_0 = arith.constant 0 : i32
    %c0_i32_1 = arith.constant 0 : i32
    return %c0_i32, %c0_i32_0 : i32, i32
  }
}

</mosaic_0001>

<llo_original>
// kernel: forward.1
$region0: #{forward.1}
  #allocation0 [shape = 'u32[]', space=smem, size = 0x4, offset = 0x4, fixed_abs, tag = 'smem constant byte address 0x4 - core index']
  #allocation1 [shape = 'u32[144,128]{1,0:T(1,128)}', space=vmem, size = 0x12000, scoped, tag = 'internal scratch']
  #allocation2 [shape = 'f32[8,64]{1,0:T(8,128)}', space=vmem, size = 0x1000, scoped, tag = 'scratch operand']
  %s0 = inlined_call_operand.vmem [shape: f32[8,64], index: 0, kind: input, shape index: {}]
  %s1 = inlined_call_operand.vmem [shape: f32[32,16], index: 1, kind: input, shape index: {}]
  %s2 = inlined_call_operand.vmem [shape: f32[32,16], index: 2, kind: input, shape index: {}]
  %s3 = inlined_call_operand.vmem [shape: f32[32,32], index: 3, kind: input, shape index: {}]
  %s4 = inlined_call_operand.vmem [shape: f32[2,1,64], index: 4, kind: input, shape index: {}]
  %s5 = inlined_call_operand.vmem [shape: bf16[2,64,192], index: 5, kind: input, shape index: {}]
  %s6 = inlined_call_operand.vmem [shape: bf16[2,64,64], index: 6, kind: input, shape index: {}]
  %s7 = inlined_call_operand.vmem [shape: f32[2,1,64], index: 7, kind: input, shape index: {}]
  %s8 = inlined_call_operand.vmem [shape: bf16[2,64,256], index: 8, kind: input, shape index: {}]
  %s9 = inlined_call_operand.vmem [shape: bf16[2,128,64], index: 9, kind: input, shape index: {}]
  %s10 = inlined_call_operand.vmem [shape: f32[1,64], index: 10, kind: input, shape index: {}]
  %s11 = inlined_call_operand.vmem [shape: bf16[64,256], index: 11, kind: input, shape index: {}]
  %s12 = inlined_call_operand.hbm [shape: f32[8,64], index: 12, kind: output, shape index: {0}]
  %s13 = inlined_call_operand.hbm [shape: f32[8,256], index: 13, kind: output, shape index: {1}]
  %14 = xla_tuple %s12, %s13
  %s15 = sld [smem:[#allocation0]]
  $region97: #{forward.1} parent=0
    _
  %s17 = ssub.s32 1, %s15
  %s18 = scalar_select 0, %s17, %s15
  $region1: #{forward.1} parent=0
    #allocation3 [shape = 'u8[4096]{0}', space=vmem, size = 0x1000, scoped, tag = 'output window, operand 0, single buffered']
    #allocation4 [shape = 's32[2]{0}', space=sflag, size = 0x8, scoped, tag = 'scoped memory for forward.1']
    #allocation5 [shape = 'u8[8192]{0}', space=vmem, size = 0x2000, scoped, tag = 'output window, operand 1, single buffered']
    #allocation6 [shape = 's32[1]{0}', space=sflag, size = 0x4, scoped, tag = 'scoped memory for forward.1']
    %19 = vsyncpa [#allocation4], 0
    %20 = vsyncpa [#allocation6], 0
    loop: start=0, step=1, limit=4
    $region2: #{forward.1} parent=1 // loop_pre_header
      _
    $region3: #{forward.1} parent=1 // loop_header
      %s22 = sphi 0, %s26
      %p23 = scmp.ge.s32.totalorder %s22, 4
      %s30 = sphi 0, %s30
      %s32 = sphi 0, %s30
      %s33 = sphi 0, %s32
      %s47 = sphi 0, %s33
      %s51 = sphi 0, %s51
      %s53 = sphi 0, %s51
      %s54 = sphi 0, %s53
      %s68 = sphi 0, %s54
      %s72 = sphi 0, %s72
      %s74 = sphi 0, %s72
      %s75 = sphi 0, %s74
      %s89 = sphi 0, %s75
      %s93 = sphi 0, %s93
      %s95 = sphi 0, %s93
      %s96 = sphi 0, %s95
      %s110 = sphi 0, %s96
      %s116 = sphi 0, %s118
      %s119 = sphi 0, %s116
      %s120 = sphi 0, %s119
      %s136 = sphi 0, %s120
      %s142 = sphi 0, %s144
      %s145 = sphi 0, %s142
      %s146 = sphi 0, %s145
      %s162 = sphi 0, %s146
      %s168 = sphi 0, %s170
      %s171 = sphi 0, %s168
      %s172 = sphi 0, %s171
      %s188 = sphi 0, %s172
      %s194 = sphi 0, %s196
      %s197 = sphi 0, %s194
      %s198 = sphi 0, %s197
      %s214 = sphi 0, %s198
      %s220 = sphi 0, %s222
      %s223 = sphi 0, %s220
      %s224 = sphi 0, %s223
      %s240 = sphi 0, %s224
      %s246 = sphi 0, %s248
      %s249 = sphi 0, %s246
      %s250 = sphi 0, %s249
      %s266 = sphi 0, %s250
      %s270 = sphi 0, %s270
      %s272 = sphi 0, %s270
      %s273 = sphi 0, %s272
      %s287 = sphi 0, %s273
      %s291 = sphi 0, %s291
      %s293 = sphi 0, %s291
      %s294 = sphi 0, %s293
      %s308 = sphi 0, %s294
      %s312 = sphi 0, %s312
      %s314 = sphi 0, %s312
      %s315 = sphi 0, %s314
      %s329 = sphi 0, %s315
      %s333 = sphi 0, %s333
      %s335 = sphi 0, %s333
      %s336 = sphi 0, %s335
      %s350 = sphi 0, %s336
    $region4: #{forward.1} parent=1 // loop_header_branch
      %25 = sbr.rel (%p23) target = $region8
    $region5: #{forward.1} parent=1 // loop_body
      %s27 = ssub.s32 %s22, 1
      %s28 = ssub.s32 %s22, 2
      %s29 = sadd.s32 %s22, 1
      %s31 = sadd.s32 %s30, 1
      %p34 = scmp.eq.s32.totalorder %s22, 1
      %p35 = scmp.ne.s32.totalorder %s30, %s32
      %p36 = scmp.eq.s32.totalorder %s22, 0
      %p37 = por %p35, %p36
      %p38 = scmp.ne.s32.totalorder %s30, %s32
      %p39 = scmp.eq.s32.totalorder %s27, 1
      %p40 = por %p38, %p39
      %p41 = scmp.ne.s32.totalorder %s32, %s33
      %p42 = scmp.eq.s32.totalorder %s27, 0
      %p43 = por %p41, %p42
      %p44 = scmp.ne.s32.totalorder %s32, %s33
      %p45 = scmp.eq.s32.totalorder %s28, 1
      %p46 = por %p44, %p45
      %p48 = scmp.ne.s32.totalorder %s33, %s47
      %p49 = scmp.eq.s32.totalorder %s28, 0
      %p50 = por %p48, %p49
      %s52 = sadd.s32 %s51, 1
      %p55 = scmp.eq.s32.totalorder %s22, 1
      %p56 = scmp.ne.s32.totalorder %s51, %s53
      %p57 = scmp.eq.s32.totalorder %s22, 0
      %p58 = por %p56, %p57
      %p59 = scmp.ne.s32.totalorder %s51, %s53
      %p60 = scmp.eq.s32.totalorder %s27, 1
      %p61 = por %p59, %p60
      %p62 = scmp.ne.s32.totalorder %s53, %s54
      %p63 = scmp.eq.s32.totalorder %s27, 0
      %p64 = por %p62, %p63
      %p65 = scmp.ne.s32.totalorder %s53, %s54
      %p66 = scmp.eq.s32.totalorder %s28, 1
      %p67 = por %p65, %p66
      %p69 = scmp.ne.s32.totalorder %s54, %s68
      %p70 = scmp.eq.s32.totalorder %s28, 0
      %p71 = por %p69, %p70
      %s73 = sadd.s32 %s72, 1
      %p76 = scmp.eq.s32.totalorder %s22, 1
      %p77 = scmp.ne.s32.totalorder %s72, %s74
      %p78 = scmp.eq.s32.totalorder %s22, 0
      %p79 = por %p77, %p78
      %p80 = scmp.ne.s32.totalorder %s72, %s74
      %p81 = scmp.eq.s32.totalorder %s27, 1
      %p82 = por %p80, %p81
      %p83 = scmp.ne.s32.totalorder %s74, %s75
      %p84 = scmp.eq.s32.totalorder %s27, 0
      %p85 = por %p83, %p84
      %p86 = scmp.ne.s32.totalorder %s74, %s75
      %p87 = scmp.eq.s32.totalorder %s28, 1
      %p88 = por %p86, %p87
      %p90 = scmp.ne.s32.totalorder %s75, %s89
      %p91 = scmp.eq.s32.totalorder %s28, 0
      %p92 = por %p90, %p91
      %s94 = sadd.s32 %s93, 1
      %p97 = scmp.eq.s32.totalorder %s22, 1
      %p98 = scmp.ne.s32.totalorder %s93, %s95
      %p99 = scmp.eq.s32.totalorder %s22, 0
      %p100 = por %p98, %p99
      %p101 = scmp.ne.s32.totalorder %s93, %s95
      %p102 = scmp.eq.s32.totalorder %s27, 1
      %p103 = por %p101, %p102
      %p104 = scmp.ne.s32.totalorder %s95, %s96
      %p105 = scmp.eq.s32.totalorder %s27, 0
      %p106 = por %p104, %p105
      %p107 = scmp.ne.s32.totalorder %s95, %s96
      %p108 = scmp.eq.s32.totalorder %s28, 1
      %p109 = por %p107, %p108
      %p111 = scmp.ne.s32.totalorder %s96, %s110
      %p112 = scmp.eq.s32.totalorder %s28, 0
      %p113 = por %p111, %p112
      %s114 = ssub.s32 %s22, %s29
      %p115 = scmp.eq.s32.totalorder %s114, 0
      %s117 = sadd.s32 %s116, 1
      %s118 = scalar_select %p115, %s116, %s117
      %p121 = pneg %p115
      %p122 = scmp.eq.s32.totalorder %s22, 1
      %p123 = por %p121, %p122
      %p124 = scmp.ne.s32.totalorder %s116, %s119
      %p125 = scmp.eq.s32.totalorder %s22, 0
      %p126 = por %p124, %p125
      %p127 = scmp.ne.s32.totalorder %s116, %s119
      %p128 = scmp.eq.s32.totalorder %s27, 1
      %p129 = por %p127, %p128
      %p130 = scmp.ne.s32.totalorder %s119, %s120
      %p131 = scmp.eq.s32.totalorder %s27, 0
      %p132 = por %p130, %p131
      %p133 = scmp.ne.s32.totalorder %s119, %s120
      %p134 = scmp.eq.s32.totalorder %s28, 1
      %p135 = por %p133, %p134
      %p137 = scmp.ne.s32.totalorder %s120, %s136
      %p138 = scmp.eq.s32.totalorder %s28, 0
      %p139 = por %p137, %p138
      %s140 = ssub.s32 %s22, %s29
      %p141 = scmp.eq.s32.totalorder %s140, 0
      %s143 = sadd.s32 %s142, 1
      %s144 = scalar_select %p141, %s142, %s143
      %p147 = pneg %p141
      %p148 = scmp.eq.s32.totalorder %s22, 1
      %p149 = por %p147, %p148
      %p150 = scmp.ne.s32.totalorder %s142, %s145
      %p151 = scmp.eq.s32.totalorder %s22, 0
      %p152 = por %p150, %p151
      %p153 = scmp.ne.s32.totalorder %s142, %s145
      %p154 = scmp.eq.s32.totalorder %s27, 1
      %p155 = por %p153, %p154
      %p156 = scmp.ne.s32.totalorder %s145, %s146
      %p157 = scmp.eq.s32.totalorder %s27, 0
      %p158 = por %p156, %p157
      %p159 = scmp.ne.s32.totalorder %s145, %s146
      %p160 = scmp.eq.s32.totalorder %s28, 1
      %p161 = por %p159, %p160
      %p163 = scmp.ne.s32.totalorder %s146, %s162
      %p164 = scmp.eq.s32.totalorder %s28, 0
      %p165 = por %p163, %p164
      %s166 = ssub.s32 %s22, %s29
      %p167 = scmp.eq.s32.totalorder %s166, 0
      %s169 = sadd.s32 %s168, 1
      %s170 = scalar_select %p167, %s168, %s169
      %p173 = pneg %p167
      %p174 = scmp.eq.s32.totalorder %s22, 1
      %p175 = por %p173, %p174
      %p176 = scmp.ne.s32.totalorder %s168, %s171
      %p177 = scmp.eq.s32.totalorder %s22, 0
      %p178 = por %p176, %p177
      %p179 = scmp.ne.s32.totalorder %s168, %s171
      %p180 = scmp.eq.s32.totalorder %s27, 1
      %p181 = por %p179, %p180
      %p182 = scmp.ne.s32.totalorder %s171, %s172
      %p183 = scmp.eq.s32.totalorder %s27, 0
      %p184 = por %p182, %p183
      %p185 = scmp.ne.s32.totalorder %s171, %s172
      %p186 = scmp.eq.s32.totalorder %s28, 1
      %p187 = por %p185, %p186
      %p189 = scmp.ne.s32.totalorder %s172, %s188
      %p190 = scmp.eq.s32.totalorder %s28, 0
      %p191 = por %p189, %p190
      %s192 = ssub.s32 %s22, %s29
      %p193 = scmp.eq.s32.totalorder %s192, 0
      %s195 = sadd.s32 %s194, 1
      %s196 = scalar_select %p193, %s194, %s195
      %p199 = pneg %p193
      %p200 = scmp.eq.s32.totalorder %s22, 1
      %p201 = por %p199, %p200
      %p202 = scmp.ne.s32.totalorder %s194, %s197
      %p203 = scmp.eq.s32.totalorder %s22, 0
      %p204 = por %p202, %p203
      %p205 = scmp.ne.s32.totalorder %s194, %s197
      %p206 = scmp.eq.s32.totalorder %s27, 1
      %p207 = por %p205, %p206
      %p208 = scmp.ne.s32.totalorder %s197, %s198
      %p209 = scmp.eq.s32.totalorder %s27, 0
      %p210 = por %p208, %p209
      %p211 = scmp.ne.s32.totalorder %s197, %s198
      %p212 = scmp.eq.s32.totalorder %s28, 1
      %p213 = por %p211, %p212
      %p215 = scmp.ne.s32.totalorder %s198, %s214
      %p216 = scmp.eq.s32.totalorder %s28, 0
      %p217 = por %p215, %p216
      %s218 = ssub.s32 %s22, %s29
      %p219 = scmp.eq.s32.totalorder %s218, 0
      %s221 = sadd.s32 %s220, 1
      %s222 = scalar_select %p219, %s220, %s221
      %p225 = pneg %p219
      %p226 = scmp.eq.s32.totalorder %s22, 1
      %p227 = por %p225, %p226
      %p228 = scmp.ne.s32.totalorder %s220, %s223
      %p229 = scmp.eq.s32.totalorder %s22, 0
      %p230 = por %p228, %p229
      %p231 = scmp.ne.s32.totalorder %s220, %s223
      %p232 = scmp.eq.s32.totalorder %s27, 1
      %p233 = por %p231, %p232
      %p234 = scmp.ne.s32.totalorder %s223, %s224
      %p235 = scmp.eq.s32.totalorder %s27, 0
      %p236 = por %p234, %p235
      %p237 = scmp.ne.s32.totalorder %s223, %s224
      %p238 = scmp.eq.s32.totalorder %s28, 1
      %p239 = por %p237, %p238
      %p241 = scmp.ne.s32.totalorder %s224, %s240
      %p242 = scmp.eq.s32.totalorder %s28, 0
      %p243 = por %p241, %p242
      %s244 = ssub.s32 %s22, %s29
      %p245 = scmp.eq.s32.totalorder %s244, 0
      %s247 = sadd.s32 %s246, 1
      %s248 = scalar_select %p245, %s246, %s247
      %p251 = pneg %p245
      %p252 = scmp.eq.s32.totalorder %s22, 1
      %p253 = por %p251, %p252
      %p254 = scmp.ne.s32.totalorder %s246, %s249
      %p255 = scmp.eq.s32.totalorder %s22, 0
      %p256 = por %p254, %p255
      %p257 = scmp.ne.s32.totalorder %s246, %s249
      %p258 = scmp.eq.s32.totalorder %s27, 1
      %p259 = por %p257, %p258
      %p260 = scmp.ne.s32.totalorder %s249, %s250
      %p261 = scmp.eq.s32.totalorder %s27, 0
      %p262 = por %p260, %p261
      %p263 = scmp.ne.s32.totalorder %s249, %s250
      %p264 = scmp.eq.s32.totalorder %s28, 1
      %p265 = por %p263, %p264
      %p267 = scmp.ne.s32.totalorder %s250, %s266
      %p268 = scmp.eq.s32.totalorder %s28, 0
      %p269 = por %p267, %p268
      %s271 = sadd.s32 %s270, 1
      %p274 = scmp.eq.s32.totalorder %s22, 1
      %p275 = scmp.ne.s32.totalorder %s270, %s272
      %p276 = scmp.eq.s32.totalorder %s22, 0
      %p277 = por %p275, %p276
      %p278 = scmp.ne.s32.totalorder %s270, %s272
      %p279 = scmp.eq.s32.totalorder %s27, 1
      %p280 = por %p278, %p279
      %p281 = scmp.ne.s32.totalorder %s272, %s273
      %p282 = scmp.eq.s32.totalorder %s27, 0
      %p283 = por %p281, %p282
      %p284 = scmp.ne.s32.totalorder %s272, %s273
      %p285 = scmp.eq.s32.totalorder %s28, 1
      %p286 = por %p284, %p285
      %p288 = scmp.ne.s32.totalorder %s273, %s287
      %p289 = scmp.eq.s32.totalorder %s28, 0
      %p290 = por %p288, %p289
      %s292 = sadd.s32 %s291, 1
      %p295 = scmp.eq.s32.totalorder %s22, 1
      %p296 = scmp.ne.s32.totalorder %s291, %s293
      %p297 = scmp.eq.s32.totalorder %s22, 0
      %p298 = por %p296, %p297
      %p299 = scmp.ne.s32.totalorder %s291, %s293
      %p300 = scmp.eq.s32.totalorder %s27, 1
      %p301 = por %p299, %p300
      %p302 = scmp.ne.s32.totalorder %s293, %s294
      %p303 = scmp.eq.s32.totalorder %s27, 0
      %p304 = por %p302, %p303
      %p305 = scmp.ne.s32.totalorder %s293, %s294
      %p306 = scmp.eq.s32.totalorder %s28, 1
      %p307 = por %p305, %p306
      %p309 = scmp.ne.s32.totalorder %s294, %s308
      %p310 = scmp.eq.s32.totalorder %s28, 0
      %p311 = por %p309, %p310
      %s313 = sadd.s32 %s312, 1
      %p316 = scmp.eq.s32.totalorder %s22, 1
      %p317 = scmp.ne.s32.totalorder %s312, %s314
      %p318 = scmp.eq.s32.totalorder %s22, 0
      %p319 = por %p317, %p318
      %p320 = scmp.ne.s32.totalorder %s312, %s314
      %p321 = scmp.eq.s32.totalorder %s27, 1
      %p322 = por %p320, %p321
      %p323 = scmp.ne.s32.totalorder %s314, %s315
      %p324 = scmp.eq.s32.totalorder %s27, 0
      %p325 = por %p323, %p324
      %p326 = scmp.ne.s32.totalorder %s314, %s315
      %p327 = scmp.eq.s32.totalorder %s28, 1
      %p328 = por %p326, %p327
      %p330 = scmp.ne.s32.totalorder %s315, %s329
      %p331 = scmp.eq.s32.totalorder %s28, 0
      %p332 = por %p330, %p331
      %s334 = sadd.s32 %s333, 1
      %p337 = scmp.eq.s32.totalorder %s22, 1
      %p338 = scmp.ne.s32.totalorder %s333, %s335
      %p339 = scmp.eq.s32.totalorder %s22, 0
      %p340 = por %p338, %p339
      %p341 = scmp.ne.s32.totalorder %s333, %s335
      %p342 = scmp.eq.s32.totalorder %s27, 1
      %p343 = por %p341, %p342
      %p344 = scmp.ne.s32.totalorder %s335, %s336
      %p345 = scmp.eq.s32.totalorder %s27, 0
      %p346 = por %p344, %p345
      %p347 = scmp.ne.s32.totalorder %s335, %s336
      %p348 = scmp.eq.s32.totalorder %s28, 1
      %p349 = por %p347, %p348
      %p351 = scmp.ne.s32.totalorder %s336, %s350
      %p352 = scmp.eq.s32.totalorder %s28, 0
      %p353 = por %p351, %p352
      %p354 = scmp.le.s32.totalorder 1, %s22
      %p355 = scmp.lt.s32.totalorder %s22, 3
      %p356 = pnand %p354, %p355
      %p357 = pneg %p356
      // Predicated region
      $region9: #{forward.1} parent=5 // pred_check
        _
      $region10: #{forward.1} parent=5 // pred_check_branch
        %359 = sbr.rel (%p356) target = $region12
      $region11: #{forward.1} parent=5 // pred_region
        %s360 = ssub.s32 %s22, 1
        // Predicated region
        $region13: #{forward.1} parent=11 // pred_check
          %p361 = pneg %p43
        $region14: #{forward.1} parent=11 // pred_check_branch
          %363 = sbr.rel (%p361) target = $region16
        $region15: #{forward.1} parent=11 // pred_region
          _
        $region16: #{forward.1} parent=11 // pred_fallthru
          _
        // Predicated region
        $region17: #{forward.1} parent=11 // pred_check
          %p364 = pneg %p64
        $region18: #{forward.1} parent=11 // pred_check_branch
          %366 = sbr.rel (%p364) target = $region20
        $region19: #{forward.1} parent=11 // pred_region
          _
        $region20: #{forward.1} parent=11 // pred_fallthru
          _
        // Predicated region
        $region21: #{forward.1} parent=11 // pred_check
          %p367 = pneg %p85
        $region22: #{forward.1} parent=11 // pred_check_branch
          %369 = sbr.rel (%p367) target = $region24
        $region23: #{forward.1} parent=11 // pred_region
          _
        $region24: #{forward.1} parent=11 // pred_fallthru
          _
        // Predicated region
        $region25: #{forward.1} parent=11 // pred_check
          %p370 = pneg %p106
        $region26: #{forward.1} parent=11 // pred_check_branch
          %372 = sbr.rel (%p370) target = $region28
        $region27: #{forward.1} parent=11 // pred_region
          _
        $region28: #{forward.1} parent=11 // pred_fallthru
          _
        // Predicated region
        $region29: #{forward.1} parent=11 // pred_check
          %p373 = pneg %p283
        $region30: #{forward.1} parent=11 // pred_check_branch
          %375 = sbr.rel (%p373) target = $region32
        $region31: #{forward.1} parent=11 // pred_region
          _
        $region32: #{forward.1} parent=11 // pred_fallthru
          _
        // Predicated region
        $region33: #{forward.1} parent=11 // pred_check
          %p376 = pneg %p304
        $region34: #{forward.1} parent=11 // pred_check_branch
          %378 = sbr.rel (%p376) target = $region36
        $region35: #{forward.1} parent=11 // pred_region
          _
        $region36: #{forward.1} parent=11 // pred_fallthru
          _
      $region12: #{forward.1} parent=5 // pred_fallthru
        _
      %p379 = scmp.lt.s32.totalorder %s22, 2
      // Predicated region
      $region37: #{forward.1} parent=5 // pred_check
        %p380 = pneg %p379
      $region38: #{forward.1} parent=5 // pred_check_branch
        %382 = sbr.rel (%p380) target = $region40
      $region39: #{forward.1} parent=5 // pred_region
        // Predicated region
        $region41: #{forward.1} parent=39 // pred_check
          %p383 = pneg %p126
        $region42: #{forward.1} parent=39 // pred_check_branch
          %385 = sbr.rel (%p383) target = $region44
        $region43: #{forward.1} parent=39 // pred_region
          %p386 = scmp.lt.s32.totalorder %s22, 1
          %s387 = scalar_select %p386, %s22, 1
          %s388 = scalar_lea.vmem %s4, %s387
        $region44: #{forward.1} parent=39 // pred_fallthru
          _
        // Predicated region
        $region45: #{forward.1} parent=39 // pred_check
          %p389 = pneg %p152
        $region46: #{forward.1} parent=39 // pred_check_branch
          %391 = sbr.rel (%p389) target = $region48
        $region47: #{forward.1} parent=39 // pred_region
          %p392 = scmp.lt.s32.totalorder %s22, 1
          %s393 = scalar_select %p392, %s22, 1
          %s394 = smul.addr %s393, 16
          %s395 = smul.addr %s394, 4
          %s396 = scalar_lea.vmem %s5, %s395
        $region48: #{forward.1} parent=39 // pred_fallthru
          _
        // Predicated region
        $region49: #{forward.1} parent=39 // pred_check
          %p397 = pneg %p178
        $region50: #{forward.1} parent=39 // pred_check_branch
          %399 = sbr.rel (%p397) target = $region52
        $region51: #{forward.1} parent=39 // pred_region
          %p400 = scmp.lt.s32.totalorder %s22, 1
          %s401 = scalar_select %p400, %s22, 1
          %s402 = smul.addr %s401, 8
          %s403 = smul.addr %s402, 4
          %s404 = scalar_lea.vmem %s6, %s403
        $region52: #{forward.1} parent=39 // pred_fallthru
          _
        // Predicated region
        $region53: #{forward.1} parent=39 // pred_check
          %p405 = pneg %p204
        $region54: #{forward.1} parent=39 // pred_check_branch
          %407 = sbr.rel (%p405) target = $region56
        $region55: #{forward.1} parent=39 // pred_region
          %p408 = scmp.lt.s32.totalorder %s22, 1
          %s409 = scalar_select %p408, %s22, 1
          %s410 = scalar_lea.vmem %s7, %s409
        $region56: #{forward.1} parent=39 // pred_fallthru
          _
        // Predicated region
        $region57: #{forward.1} parent=39 // pred_check
          %p411 = pneg %p230
        $region58: #{forward.1} parent=39 // pred_check_branch
          %413 = sbr.rel (%p411) target = $region60
        $region59: #{forward.1} parent=39 // pred_region
          %p414 = scmp.lt.s32.totalorder %s22, 1
          %s415 = scalar_select %p414, %s22, 1
          %s416 = smul.addr %s415, 16
          %s417 = smul.addr %s416, 4
          %s418 = scalar_lea.vmem %s8, %s417
        $region60: #{forward.1} parent=39 // pred_fallthru
          _
        // Predicated region
        $region61: #{forward.1} parent=39 // pred_check
          %p419 = pneg %p256
        $region62: #{forward.1} parent=39 // pred_check_branch
          %421 = sbr.rel (%p419) target = $region64
        $region63: #{forward.1} parent=39 // pred_region
          %p422 = scmp.lt.s32.totalorder %s22, 1
          %s423 = scalar_select %p422, %s22, 1
          %s424 = smul.addr %s423, 16
          %s425 = smul.addr %s424, 4
          %s426 = scalar_lea.vmem %s9, %s425
        $region64: #{forward.1} parent=39 // pred_fallthru
          _
      $region40: #{forward.1} parent=5 // pred_fallthru
        _
      %p427 = scmp.le.s32.totalorder 1, %s22
      %p428 = scmp.lt.s32.totalorder %s22, 3
      %p429 = pnand %p427, %p428
      %p430 = pneg %p429
      // Predicated region
      $region65: #{forward.1} parent=5 // pred_check
        _
      $region66: #{forward.1} parent=5 // pred_check_branch
        %432 = sbr.rel (%p429) target = $region68
      $region67: #{forward.1} parent=5 // pred_region
        %s433 = ssub.s32 %s22, 1
        %p434 = pneg %p43
        %p435 = pneg %p40
        %p436 = pneg %p64
        %p437 = pneg %p61
        %p438 = pneg %p85
        %p439 = pneg %p82
        %p440 = pneg %p106
        %p441 = pneg %p103
        %p442 = scmp.lt.s32.totalorder %s27, 1
        %s443 = scalar_select %p442, %s27, 1
        %s444 = scalar_lea.vmem %s4, %s443
        %p445 = pneg %p132
        %p446 = pneg %p129
        %p447 = scmp.lt.s32.totalorder %s27, 1
        %s448 = scalar_select %p447, %s27, 1
        %s449 = smul.addr %s448, 16
        %s450 = smul.addr %s449, 4
        %s451 = scalar_lea.vmem %s5, %s450
        %p452 = pneg %p158
        %p453 = pneg %p155
        %p454 = scmp.lt.s32.totalorder %s27, 1
        %s455 = scalar_select %p454, %s27, 1
        %s456 = smul.addr %s455, 8
        %s457 = smul.addr %s456, 4
        %s458 = scalar_lea.vmem %s6, %s457
        %p459 = pneg %p184
        %p460 = pneg %p181
        %p461 = scmp.lt.s32.totalorder %s27, 1
        %s462 = scalar_select %p461, %s27, 1
        %s463 = scalar_lea.vmem %s7, %s462
        %p464 = pneg %p210
        %p465 = pneg %p207
        %p466 = scmp.lt.s32.totalorder %s27, 1
        %s467 = scalar_select %p466, %s27, 1
        %s468 = smul.addr %s467, 16
        %s469 = smul.addr %s468, 4
        %s470 = scalar_lea.vmem %s8, %s469
        %p471 = pneg %p236
        %p472 = pneg %p233
        %p473 = scmp.lt.s32.totalorder %s27, 1
        %s474 = scalar_select %p473, %s27, 1
        %s475 = smul.addr %s474, 16
        %s476 = smul.addr %s475, 4
        %s477 = scalar_lea.vmem %s9, %s476
        %p478 = pneg %p262
        %p479 = pneg %p259
        %p480 = pneg %p283
        %p481 = pneg %p280
        %p482 = pneg %p304
        %p483 = pneg %p301
        %p484 = pneg %p325
        %p485 = pneg %p322
        %p486 = pneg %p346
        %p487 = pneg %p343
        %p488 = scmp.lt.s32.totalorder %s27, 1
        %s489 = scalar_select %p488, %s27, 1
        %s490 = scalar_lea.vmem %s4, %s489
        %p491 = scmp.lt.s32.totalorder %s27, 1
        %s492 = scalar_select %p491, %s27, 1
        %s493 = smul.addr %s492, 16
        %s494 = smul.addr %s493, 4
        %s495 = scalar_lea.vmem %s5, %s494
        %p496 = scmp.lt.s32.totalorder %s27, 1
        %s497 = scalar_select %p496, %s27, 1
        %s498 = smul.addr %s497, 8
        %s499 = smul.addr %s498, 4
        %s500 = scalar_lea.vmem %s6, %s499
        %p501 = scmp.lt.s32.totalorder %s27, 1
        %s502 = scalar_select %p501, %s27, 1
        %s503 = scalar_lea.vmem %s7, %s502
        %p504 = scmp.lt.s32.totalorder %s27, 1
        %s505 = scalar_select %p504, %s27, 1
        %s506 = smul.addr %s505, 16
        %s507 = smul.addr %s506, 4
        %s508 = scalar_lea.vmem %s8, %s507
        %p509 = scmp.lt.s32.totalorder %s27, 1
        %s510 = scalar_select %p509, %s27, 1
        %s511 = smul.addr %s510, 16
        %s512 = smul.addr %s511, 4
        %s513 = scalar_lea.vmem %s9, %s512
        %p515 = scmp.eq.s32.totalorder %s27, 0
        // Predicated region
        $region69: #{forward.1} parent=67 // pred_check
          %p516 = pneg %p515
        $region70: #{forward.1} parent=67 // pred_check_branch
          %518 = sbr.rel (%p516) target = $region72
        $region71: #{forward.1} parent=67 // pred_region
          %v519 = vld [vmem:[%s0] sm:$0xff]
          %vm520 = vcmask 523264
          %521 = vst.msk [vmem:[#allocation2] sm:$0xff] %vm520, %v519
        $region72: #{forward.1} parent=67 // pred_fallthru
          _
        %v522 = vld [vmem:[#allocation2] sm:$0xff]
        %v523 = vld [vmem:[%s1] sm:$0xff]
        %v524 = vld [vmem:[%s1 + $0x8] sm:$0xff]
        %v525 = vld [vmem:[%s1 + $0x10] sm:$0xff]
        %v526 = vld [vmem:[%s1 + $0x18] sm:$0xff]
        %v527 = vld [vmem:[%s2] sm:$0xff]
        %v528 = vld [vmem:[%s2 + $0x8] sm:$0xff]
        %v529 = vld [vmem:[%s2 + $0x10] sm:$0xff]
        %v530 = vld [vmem:[%s2 + $0x18] sm:$0xff]
        %v531 = vld [vmem:[%s3] sm:$0xff]
        %v532 = vld [vmem:[%s3 + $0x8] sm:$0xff]
        %v533 = vld [vmem:[%s3 + $0x10] sm:$0xff]
        %v534 = vld [vmem:[%s3 + $0x18] sm:$0xff]
        %v535 = vld [vmem:[%s490] sm:$0x1]
        %v536 = vmul.f32 %v522, %v522
        %vm537 = vcmask 523264
        %v538 = vsel %vm537, %v536, 0.0
        %539 = vadd.xlane.f32.xlu0 %v538
        %v540 = vpop.xlane.xlu0 %539
        %v541 = vrcp.pop 64.0
        %v542 = vmul.f32 %v540, %v541
        %v543 = vadd.f32 %v542, 1e-06
        %v544 = vrsqrt.pop %v543
        %v545 = vmul.f32 %v522, %v544
        %v547 = vlaneseq
        %v548 = vshrl.u32 %v547, 7
        %v549 = vsub.s32 0, %v548
        %v550 = vrot.slane %v535, %v549
        %v552 = vmul.f32 %v545, %v550
        %v553 = vpack.c.bf16 %v552, %v552
        %v554 = vld [vmem:[%s495] sm:$0xff]
        %v555 = vld [vmem:[%s495 + $0x8] sm:$0xff]
        %v556 = vld [vmem:[%s495 + $0x10] sm:$0xff]
        %v557 = vld [vmem:[%s495 + $0x18] sm:$0xff]
        %v558 = vld [vmem:[%s495 + $0x20] sm:$0xff]
        %v559 = vld [vmem:[%s495 + $0x28] sm:$0xff]
        %v560 = vld [vmem:[%s495 + $0x30] sm:$0xff]
        %v561 = vld [vmem:[%s495 + $0x38] sm:$0xff]
        %v570 = vunpack.c.l.b16 %v554
        %v571 = vunpack.c.h.b16 %v554
        %v572 = vunpack.c.l.b16 %v555
        %v573 = vunpack.c.h.b16 %v555
        %v574 = vunpack.c.l.b16 %v556
        %v575 = vunpack.c.h.b16 %v556
        %v576 = vunpack.c.l.b16 %v557
        %v577 = vunpack.c.h.b16 %v557
        %v578 = vunpack.c.l.b16 %v558
        %v579 = vunpack.c.h.b16 %v558
        %v580 = vunpack.c.l.b16 %v559
        %v581 = vunpack.c.h.b16 %v559
        %v582 = vunpack.c.l.b16 %v560
        %v583 = vunpack.c.h.b16 %v560
        %v584 = vunpack.c.l.b16 %v561
        %v585 = vunpack.c.h.b16 %v561
        %v586 = vpack.c.b16 %v572, %v570
        %v587 = vpack.c.b16 %v573, %v571
        %v588 = vpack.c.b16 %v576, %v574
        %v589 = vpack.c.b16 %v577, %v575
        %v590 = vpack.c.b16 %v580, %v578
        %v591 = vpack.c.b16 %v581, %v579
        %v592 = vpack.c.b16 %v584, %v582
        %v593 = vpack.c.b16 %v585, %v583
        %v603 = vsel %vm537, %v553, 0
        %605 = vmatprep.subr.bf16.mxu0 0
        %606 = vmatpush1.bf16.msra.mxu0 0
        %607 = vmatprep.subr.bf16.mxu0 0
        %608 = vmatpush1.bf16.msra.mxu0 0
        %609 = vmatprep.subr.bf16.mxu0 0
        %610 = vmatpush1.bf16.msra.mxu0 0
        %611 = vmatprep.subr.bf16.mxu0 0
        %612 = vmatpush1.bf16.msra.mxu0 0
        %613 = vmatprep.subr.bf16.mxu0 %v593
        %614 = vmatpush1.bf16.msra.mxu0 %v592
        %615 = vmatprep.subr.bf16.mxu0 %v591
        %616 = vmatpush1.bf16.msra.mxu0 %v590
        %617 = vmatprep.subr.bf16.mxu0 %v589
        %618 = vmatpush1.bf16.msra.mxu0 %v588
        %619 = vmatprep.subr.bf16.mxu0 %v587
        %620 = vmatpush1.bf16.msra.mxu0 %v586
        %621 = vmatprep.subr.bf16.mxu0 0
        %622 = vmatpush2.bf16.msra.mxu0 0
        %623 = vmatprep.subr.bf16.mxu0 0
        %624 = vmatpush2.bf16.msra.mxu0 0
        %625 = vmatprep.subr.bf16.mxu0 0
        %626 = vmatpush2.bf16.msra.mxu0 0
        %627 = vmatprep.subr.bf16.mxu0 0
        %628 = vmatpush2.bf16.msra.mxu0 0
        %629 = vmatprep.subr.bf16.mxu0 0
        %630 = vmatpush2.bf16.msra.mxu0 0
        %631 = vmatprep.subr.bf16.mxu0 0
        %632 = vmatpush2.bf16.msra.mxu0 0
        %633 = vmatprep.subr.bf16.mxu0 0
        %634 = vmatpush2.bf16.msra.mxu0 0
        %635 = vmatprep.subr.bf16.mxu0 0
        %636 = vmatpush2.bf16.msra.mxu0 0
        %637 = vmatprep.mubr.bf16.mxu0 0
        %638 = vmatmul.mubr.bf16.gmra.mxu0 %v603
        %v639 = vpop.f32.mrf.mxu0
        %v640 = vadd.f32 0.0, %v639
        %v641 = vpop.f32.mrf.mxu0
        %v642 = vadd.f32 0.0, %v641
        %v643 = vpop.f32.mrf.mxu0
        %v644 = vpop.f32.mrf.mxu0
        %645 = vdwg.mxu0
        %647 = vrot.lane.b32.xlu0 %v640, 112
        %v648 = vpop.permute.xlu0 %647
        %650 = vrot.lane.b32.xlu0 %v640, 96
        %v651 = vpop.permute.xlu0 %650
        %653 = vrot.lane.b32.xlu0 %v640, 80
        %v654 = vpop.permute.xlu0 %653
        %v656 = vmul.f32 %v640, %v523
        %v657 = vmul.f32 %v648, %v524
        %v658 = vmul.f32 %v651, %v525
        %v659 = vmul.f32 %v654, %v526
        %vm660 = vcmask 1047680
        %661 = vrot.lane.b32.xlu0 %v640, 16
        %v662 = vpop.permute.xlu0 %661
        %v663 = vsel %vm660, %v662, %v640
        %664 = vrot.lane.b32.xlu0 %v648, 16
        %v665 = vpop.permute.xlu0 %664
        %v666 = vsel %vm660, %v665, %v648
        %667 = vrot.lane.b32.xlu0 %v651, 16
        %v668 = vpop.permute.xlu0 %667
        %v669 = vsel %vm660, %v668, %v651
        %670 = vrot.lane.b32.xlu0 %v654, 16
        %v671 = vpop.permute.xlu0 %670
        %v672 = vsel %vm660, %v671, %v654
        %673 = vrot.lane.b32.xlu0 %v663, 16
        %v674 = vpop.permute.xlu0 %673
        %675 = vrot.lane.b32.xlu0 %v666, 16
        %v676 = vpop.permute.xlu0 %675
        %677 = vrot.lane.b32.xlu0 %v669, 16
        %v678 = vpop.permute.xlu0 %677
        %679 = vrot.lane.b32.xlu0 %v672, 16
        %v680 = vpop.permute.xlu0 %679
        %v681 = vsel %vm660, %v674, %v640
        %v682 = vsel %vm660, %v676, %v648
        %v683 = vsel %vm660, %v678, %v651
        %v684 = vsel %vm660, %v680, %v654
        %689 = vrot.lane.b32.xlu0 %v527, 8
        %v690 = vpop.permute.xlu0 %689
        %691 = vrot.lane.b32.xlu0 %v528, 8
        %v692 = vpop.permute.xlu0 %691
        %693 = vrot.lane.b32.xlu0 %v529, 8
        %v694 = vpop.permute.xlu0 %693
        %695 = vrot.lane.b32.xlu0 %v530, 8
        %v696 = vpop.permute.xlu0 %695
        %v701 = vmul.f32 %v681, %v690
        %v702 = vmul.f32 %v682, %v692
        %v703 = vmul.f32 %v683, %v694
        %v704 = vmul.f32 %v684, %v696
        %709 = vrot.lane.b32.xlu0 %v701, 120
        %v710 = vpop.permute.xlu0 %709
        %711 = vrot.lane.b32.xlu0 %v702, 120
        %v712 = vpop.permute.xlu0 %711
        %713 = vrot.lane.b32.xlu0 %v703, 120
        %v714 = vpop.permute.xlu0 %713
        %715 = vrot.lane.b32.xlu0 %v704, 120
        %v716 = vpop.permute.xlu0 %715
        %v721 = vadd.f32 %v656, %v710
        %v722 = vadd.f32 %v657, %v712
        %v723 = vadd.f32 %v658, %v714
        %v724 = vadd.f32 %v659, %v716
        %729 = vrot.lane.b32.xlu0 %v523, 64
        %v730 = vpop.permute.xlu0 %729
        %731 = vrot.lane.b32.xlu0 %v524, 64
        %v732 = vpop.permute.xlu0 %731
        %733 = vrot.lane.b32.xlu0 %v525, 64
        %v734 = vpop.permute.xlu0 %733
        %735 = vrot.lane.b32.xlu0 %v526, 64
        %v736 = vpop.permute.xlu0 %735
        %v741 = vmul.f32 %v640, %v730
        %v742 = vmul.f32 %v648, %v732
        %v743 = vmul.f32 %v651, %v734
        %v744 = vmul.f32 %v654, %v736
        %745 = vrot.lane.b32.xlu0 %v640, 64
        %v746 = vpop.permute.xlu0 %745
        %747 = vrot.lane.b32.xlu0 %v648, 64
        %v748 = vpop.permute.xlu0 %747
        %749 = vrot.lane.b32.xlu0 %v651, 64
        %v750 = vpop.permute.xlu0 %749
        %751 = vrot.lane.b32.xlu0 %v654, 64
        %v752 = vpop.permute.xlu0 %751
        %757 = vrot.lane.b32.xlu0 %v746, 16
        %v758 = vpop.permute.xlu0 %757
        %v759 = vsel %vm660, %v758, %v746
        %760 = vrot.lane.b32.xlu0 %v748, 16
        %v761 = vpop.permute.xlu0 %760
        %v762 = vsel %vm660, %v761, %v748
        %763 = vrot.lane.b32.xlu0 %v750, 16
        %v764 = vpop.permute.xlu0 %763
        %v765 = vsel %vm660, %v764, %v750
        %766 = vrot.lane.b32.xlu0 %v752, 16
        %v767 = vpop.permute.xlu0 %766
        %v768 = vsel %vm660, %v767, %v752
        %769 = vrot.lane.b32.xlu0 %v759, 16
        %v770 = vpop.permute.xlu0 %769
        %771 = vrot.lane.b32.xlu0 %v762, 16
        %v772 = vpop.permute.xlu0 %771
        %773 = vrot.lane.b32.xlu0 %v765, 16
        %v774 = vpop.permute.xlu0 %773
        %775 = vrot.lane.b32.xlu0 %v768, 16
        %v776 = vpop.permute.xlu0 %775
        %v777 = vsel %vm660, %v770, %v746
        %v778 = vsel %vm660, %v772, %v748
        %v779 = vsel %vm660, %v774, %v750
        %v780 = vsel %vm660, %v776, %v752
        %v781 = vmul.f32 %v777, %v690
        %v782 = vmul.f32 %v778, %v692
        %v783 = vmul.f32 %v779, %v694
        %v784 = vmul.f32 %v780, %v696
        %789 = vrot.lane.b32.xlu0 %v781, 56
        %v790 = vpop.permute.xlu0 %789
        %791 = vrot.lane.b32.xlu0 %v782, 56
        %v792 = vpop.permute.xlu0 %791
        %793 = vrot.lane.b32.xlu0 %v783, 56
        %v794 = vpop.permute.xlu0 %793
        %795 = vrot.lane.b32.xlu0 %v784, 56
        %v796 = vpop.permute.xlu0 %795
        %v801 = vadd.f32 %v741, %v790
        %v802 = vadd.f32 %v742, %v792
        %v803 = vadd.f32 %v743, %v794
        %v804 = vadd.f32 %v744, %v796
        %806 = vrot.lane.b32.xlu0 %v642, 112
        %v807 = vpop.permute.xlu0 %806
        %809 = vrot.lane.b32.xlu0 %v642, 96
        %v810 = vpop.permute.xlu0 %809
        %812 = vrot.lane.b32.xlu0 %v642, 80
        %v813 = vpop.permute.xlu0 %812
        %819 = vrot.lane.b32.xlu0 %v801, 64
        %v820 = vpop.permute.xlu0 %819
        %821 = vrot.lane.b32.xlu0 %v802, 64
        %v822 = vpop.permute.xlu0 %821
        %823 = vrot.lane.b32.xlu0 %v803, 64
        %v824 = vpop.permute.xlu0 %823
        %825 = vrot.lane.b32.xlu0 %v804, 64
        %v826 = vpop.permute.xlu0 %825
        %vm827 = vcmask 130048
        %v829 = vsel %vm827, %v721, 0
        %v832 = vsel %vm827, %v722, 0
        %v835 = vsel %vm827, %v723, 0
        %v838 = vsel %vm827, %v724, 0
        %v840 = vsel %vm827, %v820, 0
        %v842 = vsel %vm827, %v822, 0
        %v844 = vsel %vm827, %v824, 0
        %v846 = vsel %vm827, %v826, 0
        %848 = vmatprep.subr.mxu0 0.0
        %849 = vmatpush1.xpose.msra.mxu0 0.0
        %850 = vmatprep.subr.mxu0 0.0
        %851 = vmatpush1.xpose.msra.mxu0 0.0
        %852 = vmatprep.subr.mxu0 0.0
        %853 = vmatpush1.xpose.msra.mxu0 0.0
        %854 = vmatprep.subr.mxu0 0.0
        %855 = vmatpush1.xpose.msra.mxu0 0.0
        %856 = vmatprep.subr.mxu0 0.0
        %857 = vmatpush1.xpose.msra.mxu0 0.0
        %858 = vmatprep.subr.mxu0 0.0
        %859 = vmatpush1.xpose.msra.mxu0 0.0
        %860 = vmatprep.subr.mxu0 0.0
        %861 = vmatpush1.xpose.msra.mxu0 0.0
        %862 = vmatprep.subr.mxu0 0.0
        %863 = vmatpush1.xpose.msra.mxu0 0.0
        %864 = vmatprep.subr.mxu0 0.0
        %865 = vmatpush1.xpose.msra.mxu0 0.0
        %866 = vmatprep.subr.mxu0 0.0
        %867 = vmatpush1.xpose.msra.mxu0 0.0
        %868 = vmatprep.subr.mxu0 0.0
        %869 = vmatpush1.xpose.msra.mxu0 0.0
        %870 = vmatprep.subr.mxu0 0.0
        %871 = vmatpush1.xpose.msra.mxu0 0.0
        %872 = vmatprep.subr.mxu0 0.0
        %873 = vmatpush1.xpose.msra.mxu0 %v846
        %874 = vmatprep.subr.mxu0 0.0
        %875 = vmatpush1.xpose.msra.mxu0 %v844
        %876 = vmatprep.subr.mxu0 0.0
        %877 = vmatpush1.xpose.msra.mxu0 %v842
        %878 = vmatprep.subr.mxu0 0.0
        %879 = vmatpush1.xpose.msra.mxu0 %v840
        %880 = vmatprep.subr.mxu0 0.0
        %881 = vmatpush2.xpose.msra.mxu0 0.0
        %882 = vmatprep.subr.mxu0 0.0
        %883 = vmatpush2.xpose.msra.mxu0 0.0
        %884 = vmatprep.subr.mxu0 0.0
        %885 = vmatpush2.xpose.msra.mxu0 0.0
        %886 = vmatprep.subr.mxu0 0.0
        %887 = vmatpush2.xpose.msra.mxu0 0.0
        %888 = vmatprep.subr.mxu0 0.0
        %889 = vmatpush2.xpose.msra.mxu0 0.0
        %890 = vmatprep.subr.mxu0 0.0
        %891 = vmatpush2.xpose.msra.mxu0 0.0
        %892 = vmatprep.subr.mxu0 0.0
        %893 = vmatpush2.xpose.msra.mxu0 0.0
        %894 = vmatprep.subr.mxu0 0.0
        %895 = vmatpush2.xpose.msra.mxu0 0.0
        %896 = vmatprep.subr.mxu0 0.0
        %897 = vmatpush2.xpose.msra.mxu0 0.0
        %898 = vmatprep.subr.mxu0 0.0
        %899 = vmatpush2.xpose.msra.mxu0 0.0
        %900 = vmatprep.subr.mxu0 0.0
        %901 = vmatpush2.xpose.msra.mxu0 0.0
        %902 = vmatprep.subr.mxu0 0.0
        %903 = vmatpush2.xpose.msra.mxu0 0.0
        %904 = vmatprep.subr.mxu0 0.0
        %905 = vmatpush2.xpose.msra.mxu0 0.0
        %906 = vmatprep.subr.mxu0 0.0
        %907 = vmatpush2.xpose.msra.mxu0 0.0
        %908 = vmatprep.subr.mxu0 0.0
        %909 = vmatpush2.xpose.msra.mxu0 0.0
        %910 = vmatprep.subr.mxu0 0.0
        %911 = vmatpush2.xpose.msra.mxu0 0.0
        %912 = vmatprep.mubr.f32.mxu0 0.0
        %913 = vmatmul.mubr.f32.gmra.mxu0 %v829
        %v914 = vpop.f32.mrf.mxu0
        %v915 = vadd.f32 %v531, %v914
        %v916 = vpop.f32.mrf.mxu0
        %917 = vmatprep.mubr.f32.mxu0 0.0
        %918 = vmatmul.mubr.f32.gmra.mxu0 %v832
        %v919 = vpop.f32.mrf.mxu0
        %v920 = vadd.f32 %v532, %v919
        %v921 = vpop.f32.mrf.mxu0
        %922 = vmatprep.mubr.f32.mxu0 0.0
        %923 = vmatmul.mubr.f32.gmra.mxu0 %v835
        %v924 = vpop.f32.mrf.mxu0
        %v925 = vadd.f32 %v533, %v924
        %v926 = vpop.f32.mrf.mxu0
        %927 = vmatprep.mubr.f32.mxu0 0.0
        %928 = vmatmul.mubr.f32.gmra.mxu0 %v838
        %v929 = vpop.f32.mrf.mxu0
        %v930 = vadd.f32 %v534, %v929
        %v931 = vpop.f32.mrf.mxu0
        %932 = vdwg.mxu0
        %vm933 = vcmask 261120
        %v934 = vsel %vm933, %v915, -inf
        %935 = vmax.xlane.f32.xlu0 %v934
        %v936 = vpop.xlane.xlu0 %935
        %v937 = vsel %vm933, %v920, -inf
        %938 = vmax.xlane.f32.xlu0 %v937
        %v939 = vpop.xlane.xlu0 %938
        %v940 = vsel %vm933, %v925, -inf
        %941 = vmax.xlane.f32.xlu0 %v940
        %v942 = vpop.xlane.xlu0 %941
        %v943 = vsel %vm933, %v930, -inf
        %944 = vmax.xlane.f32.xlu0 %v943
        %v945 = vpop.xlane.xlu0 %944
        %v946 = vsub.f32 %v915, %v936
        %v947 = vsub.f32 %v920, %v939
        %v948 = vsub.f32 %v925, %v942
        %v949 = vsub.f32 %v930, %v945
        %v950 = vmul.f32 %v946, 1.442695
        %v951 = vpow.pop %v950
        %v952 = vmul.f32 %v947, 1.442695
        %v953 = vpow.pop %v952
        %v954 = vmul.f32 %v948, 1.442695
        %v955 = vpow.pop %v954
        %v956 = vmul.f32 %v949, 1.442695
        %v957 = vpow.pop %v956
        %v958 = vsel %vm933, %v951, 0.0
        %959 = vadd.xlane.f32.xlu0 %v958
        %v960 = vpop.xlane.xlu0 %959
        %v961 = vsel %vm933, %v953, 0.0
        %962 = vadd.xlane.f32.xlu0 %v961
        %v963 = vpop.xlane.xlu0 %962
        %v964 = vsel %vm933, %v955, 0.0
        %965 = vadd.xlane.f32.xlu0 %v964
        %v966 = vpop.xlane.xlu0 %965
        %v967 = vsel %vm933, %v957, 0.0
        %968 = vadd.xlane.f32.xlu0 %v967
        %v969 = vpop.xlane.xlu0 %968
        %v971 = vsel %vm933, %v951, 0
        %v974 = vsel %vm933, %v953, 0
        %v977 = vsel %vm933, %v955, 0
        %v980 = vsel %vm933, %v957, 0
        %982 = vmatprep.subr.mxu0 0.0
        %983 = vmatpush1.msra.mxu0 0.0
        %984 = vmatprep.subr.mxu0 0.0
        %985 = vmatpush1.msra.mxu0 0.0
        %986 = vmatprep.subr.mxu0 0.0
        %987 = vmatpush1.msra.mxu0 0.0
        %988 = vmatprep.subr.mxu0 0.0
        %989 = vmatpush1.msra.mxu0 0.0
        %990 = vmatprep.subr.mxu0 0.0
        %991 = vmatpush1.msra.mxu0 0.0
        %992 = vmatprep.subr.mxu0 0.0
        %993 = vmatpush1.msra.mxu0 0.0
        %994 = vmatprep.subr.mxu0 0.0
        %995 = vmatpush1.msra.mxu0 0.0
        %996 = vmatprep.subr.mxu0 0.0
        %997 = vmatpush1.msra.mxu0 0.0
        %998 = vmatprep.subr.mxu0 0.0
        %999 = vmatpush1.msra.mxu0 0.0
        %1000 = vmatprep.subr.mxu0 0.0
        %1001 = vmatpush1.msra.mxu0 0.0
        %1002 = vmatprep.subr.mxu0 0.0
        %1003 = vmatpush1.msra.mxu0 0.0
        %1004 = vmatprep.subr.mxu0 0.0
        %1005 = vmatpush1.msra.mxu0 0.0
        %1006 = vmatprep.subr.mxu0 0.0
        %1007 = vmatpush1.msra.mxu0 %v813
        %1008 = vmatprep.subr.mxu0 0.0
        %1009 = vmatpush1.msra.mxu0 %v810
        %1010 = vmatprep.subr.mxu0 0.0
        %1011 = vmatpush1.msra.mxu0 %v807
        %1012 = vmatprep.subr.mxu0 0.0
        %1013 = vmatpush1.msra.mxu0 %v642
        %1014 = vmatprep.subr.mxu0 0.0
        %1015 = vmatpush2.msra.mxu0 0.0
        %1016 = vmatprep.subr.mxu0 0.0
        %1017 = vmatpush2.msra.mxu0 0.0
        %1018 = vmatprep.subr.mxu0 0.0
        %1019 = vmatpush2.msra.mxu0 0.0
        %1020 = vmatprep.subr.mxu0 0.0
        %1021 = vmatpush2.msra.mxu0 0.0
        %1022 = vmatprep.subr.mxu0 0.0
        %1023 = vmatpush2.msra.mxu0 0.0
        %1024 = vmatprep.subr.mxu0 0.0
        %1025 = vmatpush2.msra.mxu0 0.0
        %1026 = vmatprep.subr.mxu0 0.0
        %1027 = vmatpush2.msra.mxu0 0.0
        %1028 = vmatprep.subr.mxu0 0.0
        %1029 = vmatpush2.msra.mxu0 0.0
        %1030 = vmatprep.subr.mxu0 0.0
        %1031 = vmatpush2.msra.mxu0 0.0
        %1032 = vmatprep.subr.mxu0 0.0
        %1033 = vmatpush2.msra.mxu0 0.0
        %1034 = vmatprep.subr.mxu0 0.0
        %1035 = vmatpush2.msra.mxu0 0.0
        %1036 = vmatprep.subr.mxu0 0.0
        %1037 = vmatpush2.msra.mxu0 0.0
        %1038 = vmatprep.subr.mxu0 0.0
        %1039 = vmatpush2.msra.mxu0 0.0
        %1040 = vmatprep.subr.mxu0 0.0
        %1041 = vmatpush2.msra.mxu0 0.0
        %1042 = vmatprep.subr.mxu0 0.0
        %1043 = vmatpush2.msra.mxu0 0.0
        %1044 = vmatprep.subr.mxu0 0.0
        %1045 = vmatpush2.msra.mxu0 0.0
        %1046 = vmatprep.mubr.f32.mxu0 0.0
        %1047 = vmatmul.mubr.f32.gmra.mxu0 %v971
        %v1048 = vpop.f32.mrf.mxu0
        %v1049 = vadd.f32 0.0, %v1048
        %v1050 = vpop.f32.mrf.mxu0
        %1051 = vmatprep.mubr.f32.mxu0 0.0
        %1052 = vmatmul.mubr.f32.gmra.mxu0 %v974
        %v1053 = vpop.f32.mrf.mxu0
        %v1054 = vadd.f32 0.0, %v1053
        %v1055 = vpop.f32.mrf.mxu0
        %1056 = vmatprep.mubr.f32.mxu0 0.0
        %1057 = vmatmul.mubr.f32.gmra.mxu0 %v977
        %v1058 = vpop.f32.mrf.mxu0
        %v1059 = vadd.f32 0.0, %v1058
        %v1060 = vpop.f32.mrf.mxu0
        %1061 = vmatprep.mubr.f32.mxu0 0.0
        %1062 = vmatmul.mubr.f32.gmra.mxu0 %v980
        %v1063 = vpop.f32.mrf.mxu0
        %v1064 = vadd.f32 0.0, %v1063
        %v1065 = vpop.f32.mrf.mxu0
        %1066 = vdwg.mxu0
        %v1067 = vrcp.pop %v960
        %v1068 = vrcp.pop %v963
        %v1069 = vrcp.pop %v966
        %v1070 = vrcp.pop %v969
        %v1071 = vmul.f32 %v1049, %v1067
        %v1072 = vmul.f32 %v1054, %v1068
        %v1073 = vmul.f32 %v1059, %v1069
        %v1074 = vmul.f32 %v1064, %v1070
        %1076 = vrot.lane.b32.xlu0 %v1072, 16
        %v1077 = vpop.permute.xlu0 %1076
        %1080 = vrot.lane.b32.xlu0 %v1073, 32
        %v1081 = vpop.permute.xlu0 %1080
        %1084 = vrot.lane.b32.xlu0 %v1074, 48
        %v1085 = vpop.permute.xlu0 %1084
        %v1087 = vsel %vm827, %v1071, %v1077
        %v1088 = vsel %vm933, %v1087, %v1081
        %vm1089 = vcmask 392192
        %v1090 = vsel %vm1089, %v1088, %v1085
        %v1091 = vpack.c.bf16 %v1090, %v1090
        %v1092 = vld [vmem:[%s500] sm:$0xf]
        %v1093 = vld [vmem:[%s500 + $0x4] sm:$0xf]
        %v1094 = vld [vmem:[%s500 + $0x8] sm:$0xf]
        %v1095 = vld [vmem:[%s500 + $0xc] sm:$0xf]
        %v1096 = vld [vmem:[%s500 + $0x10] sm:$0xf]
        %v1097 = vld [vmem:[%s500 + $0x14] sm:$0xf]
        %v1098 = vld [vmem:[%s500 + $0x18] sm:$0xf]
        %v1099 = vld [vmem:[%s500 + $0x1c] sm:$0xf]
        %v1108 = vunpack.c.l.b16 %v1092
        %v1109 = vunpack.c.l.b16 %v1093
        %v1110 = vunpack.c.l.b16 %v1094
        %v1111 = vunpack.c.l.b16 %v1095
        %v1112 = vunpack.c.l.b16 %v1096
        %v1113 = vunpack.c.l.b16 %v1097
        %v1114 = vunpack.c.l.b16 %v1098
        %v1115 = vunpack.c.l.b16 %v1099
        %v1116 = vpack.c.b16 %v1109, %v1108
        %v1117 = vpack.c.b16 %v1111, %v1110
        %v1118 = vpack.c.b16 %v1113, %v1112
        %v1119 = vpack.c.b16 %v1115, %v1114
        %v1125 = vsel %vm537, %v1091, 0
        %1127 = vmatprep.subr.bf16.mxu0 0
        %1128 = vmatpush1.bf16.msra.mxu0 0
        %1129 = vmatprep.subr.bf16.mxu0 0
        %1130 = vmatpush1.bf16.msra.mxu0 0
        %1131 = vmatprep.subr.bf16.mxu0 0
        %1132 = vmatpush1.bf16.msra.mxu0 0
        %1133 = vmatprep.subr.bf16.mxu0 0
        %1134 = vmatpush1.bf16.msra.mxu0 0
        %1135 = vmatprep.subr.bf16.mxu0 0
        %1136 = vmatpush1.bf16.msra.mxu0 %v1119
        %1137 = vmatprep.subr.bf16.mxu0 0
        %1138 = vmatpush1.bf16.msra.mxu0 %v1118
        %1139 = vmatprep.subr.bf16.mxu0 0
        %1140 = vmatpush1.bf16.msra.mxu0 %v1117
        %1141 = vmatprep.subr.bf16.mxu0 0
        %1142 = vmatpush1.bf16.msra.mxu0 %v1116
        %1143 = vmatprep.subr.bf16.mxu0 0
        %1144 = vmatpush2.bf16.msra.mxu0 0
        %1145 = vmatprep.subr.bf16.mxu0 0
        %1146 = vmatpush2.bf16.msra.mxu0 0
        %1147 = vmatprep.subr.bf16.mxu0 0
        %1148 = vmatpush2.bf16.msra.mxu0 0
        %1149 = vmatprep.subr.bf16.mxu0 0
        %1150 = vmatpush2.bf16.msra.mxu0 0
        %1151 = vmatprep.subr.bf16.mxu0 0
        %1152 = vmatpush2.bf16.msra.mxu0 0
        %1153 = vmatprep.subr.bf16.mxu0 0
        %1154 = vmatpush2.bf16.msra.mxu0 0
        %1155 = vmatprep.subr.bf16.mxu0 0
        %1156 = vmatpush2.bf16.msra.mxu0 0
        %1157 = vmatprep.subr.bf16.mxu0 0
        %1158 = vmatpush2.bf16.msra.mxu0 0
        %1159 = vmatprep.mubr.bf16.mxu0 0
        %1160 = vmatmul.mubr.bf16.gmra.mxu0 %v1125
        %v1161 = vpop.f32.mrf.mxu0
        %v1162 = vadd.f32 0.0, %v1161
        %v1163 = vpop.f32.mrf.mxu0
        %v1164 = vpop.f32.mrf.mxu0
        %v1165 = vpop.f32.mrf.mxu0
        %1166 = vdwg.mxu0
        %v1167 = vadd.f32 %v522, %v1162
        %v1168 = vld [vmem:[%s503] sm:$0x1]
        %v1169 = vmul.f32 %v1167, %v1167
        %v1170 = vsel %vm537, %v1169, 0.0
        %1171 = vadd.xlane.f32.xlu0 %v1170
        %v1172 = vpop.xlane.xlu0 %1171
        %v1173 = vmul.f32 %v1172, %v541
        %v1174 = vadd.f32 %v1173, 1e-06
        %v1175 = vrsqrt.pop %v1174
        %v1176 = vmul.f32 %v1167, %v1175
        %v1178 = vlaneseq
        %v1179 = vshrl.u32 %v1178, 7
        %v1180 = vsub.s32 0, %v1179
        %v1181 = vrot.slane %v1168, %v1180
        %v1183 = vmul.f32 %v1176, %v1181
        %v1184 = vpack.c.bf16 %v1183, %v1183
        %v1185 = vld [vmem:[%s508] sm:$0xff]
        %v1186 = vld [vmem:[%s508 + $0x8] sm:$0xff]
        %v1187 = vld [vmem:[%s508 + $0x10] sm:$0xff]
        %v1188 = vld [vmem:[%s508 + $0x18] sm:$0xff]
        %v1189 = vld [vmem:[%s508 + $0x20] sm:$0xff]
        %v1190 = vld [vmem:[%s508 + $0x28] sm:$0xff]
        %v1191 = vld [vmem:[%s508 + $0x30] sm:$0xff]
        %v1192 = vld [vmem:[%s508 + $0x38] sm:$0xff]
        %v1201 = vunpack.c.l.b16 %v1185
        %v1202 = vunpack.c.h.b16 %v1185
        %v1203 = vunpack.c.l.b16 %v1186
        %v1204 = vunpack.c.h.b16 %v1186
        %v1205 = vunpack.c.l.b16 %v1187
        %v1206 = vunpack.c.h.b16 %v1187
        %v1207 = vunpack.c.l.b16 %v1188
        %v1208 = vunpack.c.h.b16 %v1188
        %v1209 = vunpack.c.l.b16 %v1189
        %v1210 = vunpack.c.h.b16 %v1189
        %v1211 = vunpack.c.l.b16 %v1190
        %v1212 = vunpack.c.h.b16 %v1190
        %v1213 = vunpack.c.l.b16 %v1191
        %v1214 = vunpack.c.h.b16 %v1191
        %v1215 = vunpack.c.l.b16 %v1192
        %v1216 = vunpack.c.h.b16 %v1192
        %v1217 = vpack.c.b16 %v1203, %v1201
        %v1218 = vpack.c.b16 %v1204, %v1202
        %v1219 = vpack.c.b16 %v1207, %v1205
        %v1220 = vpack.c.b16 %v1208, %v1206
        %v1221 = vpack.c.b16 %v1211, %v1209
        %v1222 = vpack.c.b16 %v1212, %v1210
        %v1223 = vpack.c.b16 %v1215, %v1213
        %v1224 = vpack.c.b16 %v1216, %v1214
        %v1234 = vsel %vm537, %v1184, 0
        %1236 = vmatprep.subr.bf16.mxu0 0
        %1237 = vmatpush1.bf16.msra.mxu0 0
        %1238 = vmatprep.subr.bf16.mxu0 0
        %1239 = vmatpush1.bf16.msra.mxu0 0
        %1240 = vmatprep.subr.bf16.mxu0 0
        %1241 = vmatpush1.bf16.msra.mxu0 0
        %1242 = vmatprep.subr.bf16.mxu0 0
        %1243 = vmatpush1.bf16.msra.mxu0 0
        %1244 = vmatprep.subr.bf16.mxu0 %v1224
        %1245 = vmatpush1.bf16.msra.mxu0 %v1223
        %1246 = vmatprep.subr.bf16.mxu0 %v1222
        %1247 = vmatpush1.bf16.msra.mxu0 %v1221
        %1248 = vmatprep.subr.bf16.mxu0 %v1220
        %1249 = vmatpush1.bf16.msra.mxu0 %v1219
        %1250 = vmatprep.subr.bf16.mxu0 %v1218
        %1251 = vmatpush1.bf16.msra.mxu0 %v1217
        %1252 = vmatprep.subr.bf16.mxu0 0
        %1253 = vmatpush2.bf16.msra.mxu0 0
        %1254 = vmatprep.subr.bf16.mxu0 0
        %1255 = vmatpush2.bf16.msra.mxu0 0
        %1256 = vmatprep.subr.bf16.mxu0 0
        %1257 = vmatpush2.bf16.msra.mxu0 0
        %1258 = vmatprep.subr.bf16.mxu0 0
        %1259 = vmatpush2.bf16.msra.mxu0 0
        %1260 = vmatprep.subr.bf16.mxu0 0
        %1261 = vmatpush2.bf16.msra.mxu0 0
        %1262 = vmatprep.subr.bf16.mxu0 0
        %1263 = vmatpush2.bf16.msra.mxu0 0
        %1264 = vmatprep.subr.bf16.mxu0 0
        %1265 = vmatpush2.bf16.msra.mxu0 0
        %1266 = vmatprep.subr.bf16.mxu0 0
        %1267 = vmatpush2.bf16.msra.mxu0 0
        %1268 = vmatprep.mubr.bf16.mxu0 0
        %1269 = vmatmul.mubr.bf16.gmra.mxu0 %v1234
        %v1270 = vpop.f32.mrf.mxu0
        %v1271 = vadd.f32 0.0, %v1270
        %v1272 = vpop.f32.mrf.mxu0
        %v1273 = vadd.f32 0.0, %v1272
        %v1274 = vpop.f32.mrf.mxu0
        %v1275 = vpop.f32.mrf.mxu0
        %1276 = vdwg.mxu0
        %v1277 = vxor.u32 %v1271, 2147483648
        %v1278 = vmul.f32 %v1277, 1.442695
        %v1279 = vpow.pop %v1278
        %v1280 = vadd.f32 %v1279, 1.0
        %v1281 = vrcp.pop %v1280
        %v1282 = vmul.f32 1.0, %v1281
        %v1283 = vmul.f32 %v1271, %v1282
        %v1284 = vmul.f32 %v1283, %v1273
        %v1285 = vpack.c.bf16 %v1284, %v1284
        %v1286 = vld [vmem:[%s513] sm:$0xf]
        %v1287 = vld [vmem:[%s513 + $0x4] sm:$0xf]
        %v1288 = vld [vmem:[%s513 + $0x8] sm:$0xf]
        %v1289 = vld [vmem:[%s513 + $0xc] sm:$0xf]
        %v1290 = vld [vmem:[%s513 + $0x10] sm:$0xf]
        %v1291 = vld [vmem:[%s513 + $0x14] sm:$0xf]
        %v1292 = vld [vmem:[%s513 + $0x18] sm:$0xf]
        %v1293 = vld [vmem:[%s513 + $0x1c] sm:$0xf]
        %v1294 = vld [vmem:[%s513 + $0x20] sm:$0xf]
        %v1295 = vld [vmem:[%s513 + $0x24] sm:$0xf]
        %v1296 = vld [vmem:[%s513 + $0x28] sm:$0xf]
        %v1297 = vld [vmem:[%s513 + $0x2c] sm:$0xf]
        %v1298 = vld [vmem:[%s513 + $0x30] sm:$0xf]
        %v1299 = vld [vmem:[%s513 + $0x34] sm:$0xf]
        %v1300 = vld [vmem:[%s513 + $0x38] sm:$0xf]
        %v1301 = vld [vmem:[%s513 + $0x3c] sm:$0xf]
        %v1318 = vunpack.c.l.b16 %v1286
        %v1319 = vunpack.c.l.b16 %v1287
        %v1320 = vunpack.c.l.b16 %v1288
        %v1321 = vunpack.c.l.b16 %v1289
        %v1322 = vunpack.c.l.b16 %v1290
        %v1323 = vunpack.c.l.b16 %v1291
        %v1324 = vunpack.c.l.b16 %v1292
        %v1325 = vunpack.c.l.b16 %v1293
        %v1326 = vunpack.c.l.b16 %v1294
        %v1327 = vunpack.c.l.b16 %v1295
        %v1328 = vunpack.c.l.b16 %v1296
        %v1329 = vunpack.c.l.b16 %v1297
        %v1330 = vunpack.c.l.b16 %v1298
        %v1331 = vunpack.c.l.b16 %v1299
        %v1332 = vunpack.c.l.b16 %v1300
        %v1333 = vunpack.c.l.b16 %v1301
        %v1334 = vpack.c.b16 %v1319, %v1318
        %v1335 = vpack.c.b16 %v1321, %v1320
        %v1336 = vpack.c.b16 %v1323, %v1322
        %v1337 = vpack.c.b16 %v1325, %v1324
        %v1338 = vpack.c.b16 %v1327, %v1326
        %v1339 = vpack.c.b16 %v1329, %v1328
        %v1340 = vpack.c.b16 %v1331, %v1330
        %v1341 = vpack.c.b16 %v1333, %v1332
        %1350 = vmatprep.subr.bf16.mxu0 0
        %1351 = vmatpush1.bf16.msra.mxu0 %v1341
        %1352 = vmatprep.subr.bf16.mxu0 0
        %1353 = vmatpush1.bf16.msra.mxu0 %v1340
        %1354 = vmatprep.subr.bf16.mxu0 0
        %1355 = vmatpush1.bf16.msra.mxu0 %v1339
        %1356 = vmatprep.subr.bf16.mxu0 0
        %1357 = vmatpush1.bf16.msra.mxu0 %v1338
        %1358 = vmatprep.subr.bf16.mxu0 0
        %1359 = vmatpush1.bf16.msra.mxu0 %v1337
        %1360 = vmatprep.subr.bf16.mxu0 0
        %1361 = vmatpush1.bf16.msra.mxu0 %v1336
        %1362 = vmatprep.subr.bf16.mxu0 0
        %1363 = vmatpush1.bf16.msra.mxu0 %v1335
        %1364 = vmatprep.subr.bf16.mxu0 0
        %1365 = vmatpush1.bf16.msra.mxu0 %v1334
        %1366 = vmatprep.subr.bf16.mxu0 0
        %1367 = vmatpush2.bf16.msra.mxu0 0
        %1368 = vmatprep.subr.bf16.mxu0 0
        %1369 = vmatpush2.bf16.msra.mxu0 0
        %1370 = vmatprep.subr.bf16.mxu0 0
        %1371 = vmatpush2.bf16.msra.mxu0 0
        %1372 = vmatprep.subr.bf16.mxu0 0
        %1373 = vmatpush2.bf16.msra.mxu0 0
        %1374 = vmatprep.subr.bf16.mxu0 0
        %1375 = vmatpush2.bf16.msra.mxu0 0
        %1376 = vmatprep.subr.bf16.mxu0 0
        %1377 = vmatpush2.bf16.msra.mxu0 0
        %1378 = vmatprep.subr.bf16.mxu0 0
        %1379 = vmatpush2.bf16.msra.mxu0 0
        %1380 = vmatprep.subr.bf16.mxu0 0
        %1381 = vmatpush2.bf16.msra.mxu0 0
        %1382 = vmatprep.mubr.bf16.mxu0 0
        %1383 = vmatmul.mubr.bf16.gmra.mxu0 %v1285
        %v1384 = vpop.f32.mrf.mxu0
        %v1385 = vadd.f32 0.0, %v1384
        %v1386 = vpop.f32.mrf.mxu0
        %v1387 = vpop.f32.mrf.mxu0
        %v1388 = vpop.f32.mrf.mxu0
        %1389 = vdwg.mxu0
        %v1390 = vadd.f32 %v1167, %v1385
        %1391 = vst.msk [vmem:[#allocation2] sm:$0xff] %vm537, %v1390
        %p1392 = scmp.eq.s32.totalorder %s27, 1
        // Predicated region
        $region73: #{forward.1} parent=67 // pred_check
          %p1393 = pneg %p1392
        $region74: #{forward.1} parent=67 // pred_check_branch
          %1395 = sbr.rel (%p1393) target = $region76
        $region75: #{forward.1} parent=67 // pred_region
          %v1396 = vld [vmem:[%s10] sm:$0x1]
          %v1397 = vmul.f32 %v1390, %v1390
          %v1398 = vsel %vm537, %v1397, 0.0
          %1399 = vadd.xlane.f32.xlu0 %v1398
          %v1400 = vpop.xlane.xlu0 %1399
          %v1401 = vmul.f32 %v1400, %v541
          %v1402 = vadd.f32 %v1401, 1e-06
          %v1403 = vrsqrt.pop %v1402
          %v1404 = vmul.f32 %v1390, %v1403
          %v1406 = vlaneseq
          %v1407 = vshrl.u32 %v1406, 7
          %v1408 = vsub.s32 0, %v1407
          %v1409 = vrot.slane %v1396, %v1408
          %v1411 = vmul.f32 %v1404, %v1409
          %1412 = vst.msk [vmem:[#allocation3] sm:$0xff] %vm537, %v1411
          %v1413 = vpack.c.bf16 %v1411, %v1411
          %v1414 = vld [vmem:[%s11] sm:$0xff]
          %v1415 = vld [vmem:[%s11 + $0x8] sm:$0xff]
          %v1416 = vld [vmem:[%s11 + $0x10] sm:$0xff]
          %v1417 = vld [vmem:[%s11 + $0x18] sm:$0xff]
          %v1418 = vld [vmem:[%s11 + $0x20] sm:$0xff]
          %v1419 = vld [vmem:[%s11 + $0x28] sm:$0xff]
          %v1420 = vld [vmem:[%s11 + $0x30] sm:$0xff]
          %v1421 = vld [vmem:[%s11 + $0x38] sm:$0xff]
          %v1430 = vunpack.c.l.b16 %v1414
          %v1431 = vunpack.c.h.b16 %v1414
          %v1432 = vunpack.c.l.b16 %v1415
          %v1433 = vunpack.c.h.b16 %v1415
          %v1434 = vunpack.c.l.b16 %v1416
          %v1435 = vunpack.c.h.b16 %v1416
          %v1436 = vunpack.c.l.b16 %v1417
          %v1437 = vunpack.c.h.b16 %v1417
          %v1438 = vunpack.c.l.b16 %v1418
          %v1439 = vunpack.c.h.b16 %v1418
          %v1440 = vunpack.c.l.b16 %v1419
          %v1441 = vunpack.c.h.b16 %v1419
          %v1442 = vunpack.c.l.b16 %v1420
          %v1443 = vunpack.c.h.b16 %v1420
          %v1444 = vunpack.c.l.b16 %v1421
          %v1445 = vunpack.c.h.b16 %v1421
          %v1446 = vpack.c.b16 %v1432, %v1430
          %v1447 = vpack.c.b16 %v1433, %v1431
          %v1448 = vpack.c.b16 %v1436, %v1434
          %v1449 = vpack.c.b16 %v1437, %v1435
          %v1450 = vpack.c.b16 %v1440, %v1438
          %v1451 = vpack.c.b16 %v1441, %v1439
          %v1452 = vpack.c.b16 %v1444, %v1442
          %v1453 = vpack.c.b16 %v1445, %v1443
          %v1463 = vsel %vm537, %v1413, 0
          %1465 = vmatprep.subr.bf16.mxu0 0
          %1466 = vmatpush1.bf16.msra.mxu0 0
          %1467 = vmatprep.subr.bf16.mxu0 0
          %1468 = vmatpush1.bf16.msra.mxu0 0
          %1469 = vmatprep.subr.bf16.mxu0 0
          %1470 = vmatpush1.bf16.msra.mxu0 0
          %1471 = vmatprep.subr.bf16.mxu0 0
          %1472 = vmatpush1.bf16.msra.mxu0 0
          %1473 = vmatprep.subr.bf16.mxu0 %v1453
          %1474 = vmatpush1.bf16.msra.mxu0 %v1452
          %1475 = vmatprep.subr.bf16.mxu0 %v1451
          %1476 = vmatpush1.bf16.msra.mxu0 %v1450
          %1477 = vmatprep.subr.bf16.mxu0 %v1449
          %1478 = vmatpush1.bf16.msra.mxu0 %v1448
          %1479 = vmatprep.subr.bf16.mxu0 %v1447
          %1480 = vmatpush1.bf16.msra.mxu0 %v1446
          %1481 = vmatprep.subr.bf16.mxu0 0
          %1482 = vmatpush2.bf16.msra.mxu0 0
          %1483 = vmatprep.subr.bf16.mxu0 0
          %1484 = vmatpush2.bf16.msra.mxu0 0
          %1485 = vmatprep.subr.bf16.mxu0 0
          %1486 = vmatpush2.bf16.msra.mxu0 0
          %1487 = vmatprep.subr.bf16.mxu0 0
          %1488 = vmatpush2.bf16.msra.mxu0 0
          %1489 = vmatprep.subr.bf16.mxu0 0
          %1490 = vmatpush2.bf16.msra.mxu0 0
          %1491 = vmatprep.subr.bf16.mxu0 0
          %1492 = vmatpush2.bf16.msra.mxu0 0
          %1493 = vmatprep.subr.bf16.mxu0 0
          %1494 = vmatpush2.bf16.msra.mxu0 0
          %1495 = vmatprep.subr.bf16.mxu0 0
          %1496 = vmatpush2.bf16.msra.mxu0 0
          %1497 = vmatprep.mubr.bf16.mxu0 0
          %1498 = vmatmul.mubr.bf16.gmra.mxu0 %v1463
          %v1499 = vpop.f32.mrf.mxu0
          %v1500 = vadd.f32 0.0, %v1499
          %v1501 = vpop.f32.mrf.mxu0
          %v1502 = vadd.f32 0.0, %v1501
          %v1503 = vpop.f32.mrf.mxu0
          %v1504 = vpop.f32.mrf.mxu0
          %1505 = vdwg.mxu0
          %1506 = vst [vmem:[#allocation5] sm:$0xff] %v1500
          %1507 = vst [vmem:[#allocation5 + $0x8] sm:$0xff] %v1502
        $region76: #{forward.1} parent=67 // pred_fallthru
          _
        // Predicated region
        $region77: #{forward.1} parent=67 // pred_check
          %p1508 = pneg %p322
        $region78: #{forward.1} parent=67 // pred_check_branch
          %1510 = sbr.rel (%p1508) target = $region80
        $region79: #{forward.1} parent=67 // pred_region
          %s1512 = ssub.s32 128, 128
          %1513 = vsyncadd [#allocation4], %s1512
          %s1515 = sshll.u32 [#allocation3], 4
          %s1516 = int_to_ptr.vmem [resolvable:$true] %s1515
          %1518 = dma.vmem_to_hbm [thread:$0]  %s1516, 128, %s12, [#allocation4]
        $region80: #{forward.1} parent=67 // pred_fallthru
          _
        // Predicated region
        $region81: #{forward.1} parent=67 // pred_check
          %p1519 = pneg %p343
        $region82: #{forward.1} parent=67 // pred_check_branch
          %1521 = sbr.rel (%p1519) target = $region84
        $region83: #{forward.1} parent=67 // pred_region
          %s1523 = ssub.s32 256, 256
          %1524 = vsyncadd [#allocation6], %s1523
          %s1526 = sshll.u32 [#allocation5], 4
          %s1527 = int_to_ptr.vmem [resolvable:$true] %s1526
          %1529 = dma.vmem_to_hbm [thread:$0]  %s1527, 256, %s13, [#allocation6]
        $region84: #{forward.1} parent=67 // pred_fallthru
          _
        // Predicated region
        $region85: #{forward.1} parent=67 // pred_check
          %p1530 = pneg %p322
        $region86: #{forward.1} parent=67 // pred_check_branch
          %1532 = sbr.rel (%p1530) target = $region88
        $region87: #{forward.1} parent=67 // pred_region
          %1533 = dma.done [#allocation4], 128
        $region88: #{forward.1} parent=67 // pred_fallthru
          _
        // Predicated region
        $region89: #{forward.1} parent=67 // pred_check
          %p1534 = pneg %p343
        $region90: #{forward.1} parent=67 // pred_check_branch
          %1536 = sbr.rel (%p1534) target = $region92
        $region91: #{forward.1} parent=67 // pred_region
          %1537 = dma.done [#allocation6], 256
        $region92: #{forward.1} parent=67 // pred_fallthru
          _
      $region68: #{forward.1} parent=5 // pred_fallthru
        _
      %p1538 = scmp.le.s32.totalorder 2, %s22
      // Predicated region
      $region93: #{forward.1} parent=5 // pred_check
        %p1539 = pneg %p1538
      $region94: #{forward.1} parent=5 // pred_check_branch
        %1541 = sbr.rel (%p1539) target = $region96
      $region95: #{forward.1} parent=5 // pred_region
        %s1542 = ssub.s32 %s22, 2
      $region96: #{forward.1} parent=5 // pred_fallthru
        _
    $region6: #{forward.1} parent=1 // loop_footer
      %s26 = sadd.s32 1, %s22
    $region7: #{forward.1} parent=1 // loop_footer_branch
      %21 = sbr.rel target = $region3
    $region8: #{forward.1} parent=1 // loop_exit
      _
    %1543 = vsyncpa [#allocation4], 1
    %s1544 = scalar_lea.sflag [#allocation4], 1
    %1545 = vsyncpa %s1544, 1
    %1546 = vsyncpa [#allocation6], 1

</llo_original>
